<compile_context>
chip_gen: v5e
topology: v5e:2x2
jax: 0.10.0
libtpu: 0.0.40
codegen_flags: <defaults>
</compile_context>

<pallas_src>
import functools

import jax
import jax.numpy as jnp
from jax import lax
from jax.experimental import pallas as pl
from jax.experimental.pallas import tpu as pltpu


def _encoder_kernel(x_ref, wxa_ref, wxb_ref, b_ref, wh_ref, wo_ref, bo_ref,
                    enc_ref, hid_ref, cell_ref, *, T, B):
    H2 = wh_ref.shape[0]          # 2H  (fused fwd|bwd state width)
    H = H2 // 2

    # ---- prologue: all input projections in two MXU calls (off the chain) ----
    x2d = x_ref[...]                                            # (T*B, I)
    # forward-direction pre-gates (fwd columns) with both biases folded in
    pga = (jnp.dot(x2d, wxa_ref[...], preferred_element_type=jnp.float32)
           + b_ref[...])                                        # (T*B, 8H)
    # backward-direction pre-gates (bwd columns, zeros elsewhere)
    pgb = jnp.dot(x2d, wxb_ref[...],
                  preferred_element_type=jnp.float32)           # (T*B, 8H)

    wh = wh_ref[...]               # (2H, 8H) recurrent weights, hoisted load

    # zero initial states (PyTorch default when (h0, c0) are not supplied)
    h = jnp.zeros((B, H2), jnp.float32)   # [h_fwd | h_bwd]
    c = jnp.zeros((B, H2), jnp.float32)   # [c_fwd | c_bwd]

    # ---- fully-unrolled recurrence: ONE fused matmul per timestep ----------
    for t in range(T):
        tb = T - 1 - t                      # backward direction walks reversed
        # pre-gates for this step: fwd uses x[t], bwd uses x[tb]
        pre = pga[t * B:(t + 1) * B, :] + pgb[tb * B:(tb + 1) * B, :]
        gates = pre + jnp.dot(h, wh, preferred_element_type=jnp.float32)
        # gate blocks (each 2H wide, aligned with [fwd|bwd] state layout)
        i_g = jax.nn.sigmoid(gates[:, 0 * H2:1 * H2])
        f_g = jax.nn.sigmoid(gates[:, 1 * H2:2 * H2])
        g_g = jnp.tanh(gates[:, 2 * H2:3 * H2])
        o_g = jax.nn.sigmoid(gates[:, 3 * H2:4 * H2])
        c = f_g * c + i_g * g_g
        h = o_g * jnp.tanh(c)
        enc_ref[t, :, 0:H] = h[:, 0:H]        # forward half at position t
        enc_ref[tb, :, H:H2] = h[:, H:H2]     # backward half at position tb

    # ---- epilogue: fc_hidden & fc_cell fused into one matmul ---------------
    hc = jnp.concatenate([h, c], axis=-1)                        # (B, 4H)
    out = (jnp.dot(hc, wo_ref[...], preferred_element_type=jnp.float32)
           + bo_ref[...])                                        # (B, 2H)
    hid_ref[0] = out[:, 0:H]
    cell_ref[0] = out[:, H:H2]


def _interleave_gate_cols(wf_t, wb_t, H):
    """(K,4H) fwd + (K,4H) bwd (gate order [i|f|g|o]) -> (K,8H) interleaved
    columns [i_f|i_b|f_f|f_b|g_f|g_b|o_f|o_b]."""
    K = wf_t.shape[0]
    return jnp.stack([wf_t.reshape(K, 4, H), wb_t.reshape(K, 4, H)],
                     axis=2).reshape(K, 8 * H)


def init_encoder_params(key, input_size, hidden_size):
    """Deterministic parameter init (PyTorch-style U(-1/sqrt(H), 1/sqrt(H)))."""
    H, I = hidden_size, input_size
    k = 1.0 / jnp.sqrt(jnp.float32(H))
    names_shapes = [
        ("wih_f", (4 * H, I)), ("whh_f", (4 * H, H)),
        ("bih_f", (4 * H,)), ("bhh_f", (4 * H,)),
        ("wih_b", (4 * H, I)), ("whh_b", (4 * H, H)),
        ("bih_b", (4 * H,)), ("bhh_b", (4 * H,)),
        ("wfc_h", (H, 2 * H)), ("bfc_h", (H,)),
        ("wfc_c", (H, 2 * H)), ("bfc_c", (H,)),
    ]
    keys = jax.random.split(key, len(names_shapes))
    p = {}
    for kk, (name, shape) in zip(keys, names_shapes):
        p[name] = jax.random.uniform(kk, shape, jnp.float32, minval=-k, maxval=k)
    return p


@jax.jit
def encoder_forward(x, params):
    """x: (T, B, input_size) float32. Returns (encoder_states, hidden, cell)."""
    T, B, I = x.shape
    H = params["whh_f"].shape[1]
    f32 = jnp.float32

    # -- weight preparation (plain JAX glue, fused into the jitted graph) ----
    zI = jnp.zeros((I, 4 * H), f32)
    zH = jnp.zeros((H, 4 * H), f32)
    # input projections: fwd weights in fwd columns / bwd weights in bwd cols
    wxa = _interleave_gate_cols(params["wih_f"].T, zI, H)          # (I, 8H)
    wxb = _interleave_gate_cols(zI, params["wih_b"].T, H)          # (I, 8H)
    # folded biases (b_ih + b_hh) for both directions, interleaved
    b = _interleave_gate_cols((params["bih_f"] + params["bhh_f"])[None, :],
                              (params["bih_b"] + params["bhh_b"])[None, :],
                              H)                                   # (1, 8H)
    # block-structured recurrent weight: rows [h_f | h_b] -> interleaved gates
    wh = jnp.concatenate(
        [_interleave_gate_cols(params["whh_f"].T, zH, H),
         _interleave_gate_cols(zH, params["whh_b"].T, H)], axis=0)  # (2H, 8H)
    # fused output projection: [h_cat | c_cat] @ blockdiag(wfh, wfc)
    wo = jnp.zeros((4 * H, 2 * H), f32)
    wo = wo.at[:2 * H, :H].set(params["wfc_h"].T)
    wo = wo.at[2 * H:, H:].set(params["wfc_c"].T)                  # (4H, 2H)
    bo = jnp.concatenate([params["bfc_h"], params["bfc_c"]])[None, :]  # (1, 2H)

    x2d = x.reshape(T * B, I)

    vmem = pl.BlockSpec(memory_space=pltpu.MemorySpace.VMEM)
    enc, hidden, cell = pl.pallas_call(
        functools.partial(_encoder_kernel, T=T, B=B),
        out_shape=(
            jax.ShapeDtypeStruct((T, B, 2 * H), jnp.float32),
            jax.ShapeDtypeStruct((1, B, H), jnp.float32),
            jax.ShapeDtypeStruct((1, B, H), jnp.float32),
        ),
        in_specs=[vmem] * 7,
        out_specs=(vmem, vmem, vmem),
    )(x2d, wxa, wxb, b, wh, wo, bo)

    return enc, hidden, cell


def _reference_forward(x, params):
    """Pure-JAX reference mirroring PyTorch nn.LSTM(bidirectional) + Linear."""
    H = params["whh_f"].shape[1]
    T, B, _ = x.shape

    def run_dir(xs, wih, whh, bih, bhh):
        def cell(carry, x_t):
            h, c = carry
            gates = x_t @ wih.T + h @ whh.T + bih + bhh
            i = jax.nn.sigmoid(gates[:, 0 * H:1 * H])
            f = jax.nn.sigmoid(gates[:, 1 * H:2 * H])
            g = jnp.tanh(gates[:, 2 * H:3 * H])
            o = jax.nn.sigmoid(gates[:, 3 * H:4 * H])
            c = f * c + i * g
            h = o * jnp.tanh(c)
            return (h, c), h
        z = jnp.zeros((B, H), jnp.float32)
        (h, c), hs = lax.scan(cell, (z, z), xs)
        return hs, h, c

    hs_f, hf, cf = run_dir(x, params["wih_f"], params["whh_f"],
                           params["bih_f"], params["bhh_f"])
    hs_b, hb, cb = run_dir(x[::-1], params["wih_b"], params["whh_b"],
                           params["bih_b"], params["bhh_b"])
    enc = jnp.concatenate([hs_f, hs_b[::-1]], axis=-1)
    hidden = (jnp.concatenate([hf, hb], -1) @ params["wfc_h"].T
              + params["bfc_h"])[None]
    cellv = (jnp.concatenate([cf, cb], -1) @ params["wfc_c"].T
             + params["bfc_c"])[None]
    return enc, hidden, cellv


if __name__ == "__main__":
    # Shapes consistent with Encoder(input_size=4, hidden_size=32,
    # num_layers=1, p=0.0) applied to x of shape (seq=8, batch=2, input=4).
    T, B, I, H = 8, 2, 4, 32

    key = jax.random.PRNGKey(0)
    kx, kp = jax.random.split(key)
    x = jax.random.normal(kx, (T, B, I), jnp.float32)
    params = init_encoder_params(kp, I, H)

    enc, hidden, cell = encoder_forward(x, params)
    jax.block_until_ready((enc, hidden, cell))

    assert enc.shape == (T, B, 2 * H)
    assert hidden.shape == (1, B, H)
    assert cell.shape == (1, B, H)

    # sanity check against a pure-JAX reference (loose tol for MXU f32 path)
    enc_r, hid_r, cell_r = _reference_forward(x, params)
    assert jnp.allclose(enc, enc_r, rtol=1e-2, atol=1e-2)
    assert jnp.allclose(hidden, hid_r, rtol=1e-2, atol=1e-2)
    assert jnp.allclose(cell, cell_r, rtol=1e-2, atol=1e-2)

    print("KERNEL_OK")
</pallas_src>

<mosaic_0001>
module attributes {stable_mosaic.version = 11 : i64} {
  func.func @_encoder_kernel(%arg0: memref<16x4xf32, #tpu.memory_space<vmem>>, %arg1: memref<4x256xf32, #tpu.memory_space<vmem>>, %arg2: memref<4x256xf32, #tpu.memory_space<vmem>>, %arg3: memref<1x256xf32, #tpu.memory_space<vmem>>, %arg4: memref<64x256xf32, #tpu.memory_space<vmem>>, %arg5: memref<128x64xf32, #tpu.memory_space<vmem>>, %arg6: memref<1x64xf32, #tpu.memory_space<vmem>>, %arg7: memref<8x2x64xf32, #tpu.memory_space<vmem>>, %arg8: memref<1x2x32xf32, #tpu.memory_space<vmem>>, %arg9: memref<1x2x32xf32, #tpu.memory_space<vmem>>) attributes {dimension_semantics = [], scalar_prefetch = 0 : i64, scratch_operands = 0 : i64, tpu.core_type = #tpu.core_type<tc>} {
    %c0 = arith.constant 0 : index
    %c0_0 = arith.constant 0 : index
    %0 = vector.load %arg0[%c0, %c0_0] : memref<16x4xf32, #tpu.memory_space<vmem>>, vector<16x4xf32>
    %c0_1 = arith.constant 0 : index
    %c0_2 = arith.constant 0 : index
    %1 = vector.load %arg1[%c0_1, %c0_2] : memref<4x256xf32, #tpu.memory_space<vmem>>, vector<4x256xf32>
    %cst = arith.constant dense<0.000000e+00> : vector<16x256xf32>
    %2 = tpu.matmul %0, %1, %cst {dimension_numbers = #tpu.dot_dimension_numbers<[1], [0], [0], [1], [0, 0, 1, 1], [], []>} : vector<16x4xf32>, vector<4x256xf32>, vector<16x256xf32> -> vector<16x256xf32>
    %c0_3 = arith.constant 0 : index
    %c0_4 = arith.constant 0 : index
    %3 = vector.load %arg3[%c0_3, %c0_4] : memref<1x256xf32, #tpu.memory_space<vmem>>, vector<1x256xf32>
    %4 = vector.broadcast %3 : vector<1x256xf32> to vector<16x256xf32>
    %5 = arith.addf %2, %4 : vector<16x256xf32>
    %c0_5 = arith.constant 0 : index
    %c0_6 = arith.constant 0 : index
    %6 = vector.load %arg2[%c0_5, %c0_6] : memref<4x256xf32, #tpu.memory_space<vmem>>, vector<4x256xf32>
    %cst_7 = arith.constant dense<0.000000e+00> : vector<16x256xf32>
    %7 = tpu.matmul %0, %6, %cst_7 {dimension_numbers = #tpu.dot_dimension_numbers<[1], [0], [0], [1], [0, 0, 1, 1], [], []>} : vector<16x4xf32>, vector<4x256xf32>, vector<16x256xf32> -> vector<16x256xf32>
    %c0_8 = arith.constant 0 : index
    %c0_9 = arith.constant 0 : index
    %8 = vector.load %arg4[%c0_8, %c0_9] : memref<64x256xf32, #tpu.memory_space<vmem>>, vector<64x256xf32>
    %cst_10 = arith.constant 0.000000e+00 : f32
    %9 = vector.broadcast %cst_10 : f32 to vector<2x64xf32>
    %cst_11 = arith.constant 0.000000e+00 : f32
    %10 = vector.broadcast %cst_11 : f32 to vector<2x64xf32>
    %11 = vector.extract_strided_slice %5 {offsets = [0, 0], sizes = [2, 256], strides = [1, 1]} : vector<16x256xf32> to vector<2x256xf32>
    %12 = vector.extract_strided_slice %7 {offsets = [14, 0], sizes = [2, 256], strides = [1, 1]} : vector<16x256xf32> to vector<2x256xf32>
    %13 = arith.addf %11, %12 : vector<2x256xf32>
    %cst_12 = arith.constant dense<0.000000e+00> : vector<2x256xf32>
    %14 = tpu.matmul %9, %8, %cst_12 {dimension_numbers = #tpu.dot_dimension_numbers<[1], [0], [0], [1], [0, 0, 1, 1], [], []>} : vector<2x64xf32>, vector<64x256xf32>, vector<2x256xf32> -> vector<2x256xf32>
    %15 = arith.addf %13, %14 : vector<2x256xf32>
    %16 = vector.extract_strided_slice %15 {offsets = [0, 0], sizes = [2, 64], strides = [1, 1]} : vector<2x256xf32> to vector<2x64xf32>
    %17 = arith.negf %16 : vector<2x64xf32>
    %18 = math.exp %17 : vector<2x64xf32>
    %cst_13 = arith.constant 1.000000e+00 : f32
    %19 = vector.broadcast %cst_13 : f32 to vector<2x64xf32>
    %20 = arith.addf %19, %18 : vector<2x64xf32>
    %21 = arith.divf %19, %20 : vector<2x64xf32>
    %22 = vector.extract_strided_slice %15 {offsets = [0, 64], sizes = [2, 64], strides = [1, 1]} : vector<2x256xf32> to vector<2x64xf32>
    %23 = arith.negf %22 : vector<2x64xf32>
    %24 = math.exp %23 : vector<2x64xf32>
    %cst_14 = arith.constant 1.000000e+00 : f32
    %25 = vector.broadcast %cst_14 : f32 to vector<2x64xf32>
    %26 = arith.addf %25, %24 : vector<2x64xf32>
    %27 = arith.divf %25, %26 : vector<2x64xf32>
    %28 = vector.extract_strided_slice %15 {offsets = [0, 128], sizes = [2, 64], strides = [1, 1]} : vector<2x256xf32> to vector<2x64xf32>
    %29 = math.tanh %28 : vector<2x64xf32>
    %30 = vector.extract_strided_slice %15 {offsets = [0, 192], sizes = [2, 64], strides = [1, 1]} : vector<2x256xf32> to vector<2x64xf32>
    %31 = arith.negf %30 : vector<2x64xf32>
    %32 = math.exp %31 : vector<2x64xf32>
    %cst_15 = arith.constant 1.000000e+00 : f32
    %33 = vector.broadcast %cst_15 : f32 to vector<2x64xf32>
    %34 = arith.addf %33, %32 : vector<2x64xf32>
    %35 = arith.divf %33, %34 : vector<2x64xf32>
    %36 = arith.mulf %27, %10 : vector<2x64xf32>
    %37 = arith.mulf %21, %29 : vector<2x64xf32>
    %38 = arith.addf %36, %37 : vector<2x64xf32>
    %39 = math.tanh %38 : vector<2x64xf32>
    %40 = arith.mulf %35, %39 : vector<2x64xf32>
    %41 = vector.extract_strided_slice %40 {offsets = [0, 0], sizes = [2, 32], strides = [1, 1]} : vector<2x64xf32> to vector<2x32xf32>
    %c0_16 = arith.constant 0 : index
    %c0_17 = arith.constant 0 : index
    %c0_18 = arith.constant 0 : index
    %42 = vector.load %arg7[%c0_16, %c0_17, %c0_18] : memref<8x2x64xf32, #tpu.memory_space<vmem>>, vector<1x2x32xf32>
    %43 = vector.shape_cast %42 : vector<1x2x32xf32> to vector<2x32xf32>
    %44 = vector.shape_cast %41 : vector<2x32xf32> to vector<1x2x32xf32>
    tpu.vector_store %arg7[%c0_16, %c0_17, %c0_18], %44 {strides = array<i32>} : memref<8x2x64xf32, #tpu.memory_space<vmem>>, vector<1x2x32xf32>,
    %45 = vector.extract_strided_slice %40 {offsets = [0, 32], sizes = [2, 32], strides = [1, 1]} : vector<2x64xf32> to vector<2x32xf32>
    %c7 = arith.constant 7 : index
    %c0_19 = arith.constant 0 : index
    %c32 = arith.constant 32 : index
    %46 = vector.load %arg7[%c7, %c0_19, %c32] : memref<8x2x64xf32, #tpu.memory_space<vmem>>, vector<1x2x32xf32>
    %47 = vector.shape_cast %46 : vector<1x2x32xf32> to vector<2x32xf32>
    %48 = vector.shape_cast %45 : vector<2x32xf32> to vector<1x2x32xf32>
    tpu.vector_store %arg7[%c7, %c0_19, %c32], %48 {strides = array<i32>} : memref<8x2x64xf32, #tpu.memory_space<vmem>>, vector<1x2x32xf32>,
    %49 = vector.extract_strided_slice %5 {offsets = [2, 0], sizes = [2, 256], strides = [1, 1]} : vector<16x256xf32> to vector<2x256xf32>
    %50 = vector.extract_strided_slice %7 {offsets = [12, 0], sizes = [2, 256], strides = [1, 1]} : vector<16x256xf32> to vector<2x256xf32>
    %51 = arith.addf %49, %50 : vector<2x256xf32>
    %cst_20 = arith.constant dense<0.000000e+00> : vector<2x256xf32>
    %52 = tpu.matmul %40, %8, %cst_20 {dimension_numbers = #tpu.dot_dimension_numbers<[1], [0], [0], [1], [0, 0, 1, 1], [], []>} : vector<2x64xf32>, vector<64x256xf32>, vector<2x256xf32> -> vector<2x256xf32>
    %53 = arith.addf %51, %52 : vector<2x256xf32>
    %54 = vector.extract_strided_slice %53 {offsets = [0, 0], sizes = [2, 64], strides = [1, 1]} : vector<2x256xf32> to vector<2x64xf32>
    %55 = arith.negf %54 : vector<2x64xf32>
    %56 = math.exp %55 : vector<2x64xf32>
    %cst_21 = arith.constant 1.000000e+00 : f32
    %57 = vector.broadcast %cst_21 : f32 to vector<2x64xf32>
    %58 = arith.addf %57, %56 : vector<2x64xf32>
    %59 = arith.divf %57, %58 : vector<2x64xf32>
    %60 = vector.extract_strided_slice %53 {offsets = [0, 64], sizes = [2, 64], strides = [1, 1]} : vector<2x256xf32> to vector<2x64xf32>
    %61 = arith.negf %60 : vector<2x64xf32>
    %62 = math.exp %61 : vector<2x64xf32>
    %cst_22 = arith.constant 1.000000e+00 : f32
    %63 = vector.broadcast %cst_22 : f32 to vector<2x64xf32>
    %64 = arith.addf %63, %62 : vector<2x64xf32>
    %65 = arith.divf %63, %64 : vector<2x64xf32>
    %66 = vector.extract_strided_slice %53 {offsets = [0, 128], sizes = [2, 64], strides = [1, 1]} : vector<2x256xf32> to vector<2x64xf32>
    %67 = math.tanh %66 : vector<2x64xf32>
    %68 = vector.extract_strided_slice %53 {offsets = [0, 192], sizes = [2, 64], strides = [1, 1]} : vector<2x256xf32> to vector<2x64xf32>
    %69 = arith.negf %68 : vector<2x64xf32>
    %70 = math.exp %69 : vector<2x64xf32>
    %cst_23 = arith.constant 1.000000e+00 : f32
    %71 = vector.broadcast %cst_23 : f32 to vector<2x64xf32>
    %72 = arith.addf %71, %70 : vector<2x64xf32>
    %73 = arith.divf %71, %72 : vector<2x64xf32>
    %74 = arith.mulf %65, %38 : vector<2x64xf32>
    %75 = arith.mulf %59, %67 : vector<2x64xf32>
    %76 = arith.addf %74, %75 : vector<2x64xf32>
    %77 = math.tanh %76 : vector<2x64xf32>
    %78 = arith.mulf %73, %77 : vector<2x64xf32>
    %79 = vector.extract_strided_slice %78 {offsets = [0, 0], sizes = [2, 32], strides = [1, 1]} : vector<2x64xf32> to vector<2x32xf32>
    %c1 = arith.constant 1 : index
    %c0_24 = arith.constant 0 : index
    %c0_25 = arith.constant 0 : index
    %80 = vector.load %arg7[%c1, %c0_24, %c0_25] : memref<8x2x64xf32, #tpu.memory_space<vmem>>, vector<1x2x32xf32>
    %81 = vector.shape_cast %80 : vector<1x2x32xf32> to vector<2x32xf32>
    %82 = vector.shape_cast %79 : vector<2x32xf32> to vector<1x2x32xf32>
    tpu.vector_store %arg7[%c1, %c0_24, %c0_25], %82 {strides = array<i32>} : memref<8x2x64xf32, #tpu.memory_space<vmem>>, vector<1x2x32xf32>,
    %83 = vector.extract_strided_slice %78 {offsets = [0, 32], sizes = [2, 32], strides = [1, 1]} : vector<2x64xf32> to vector<2x32xf32>
    %c6 = arith.constant 6 : index
    %c0_26 = arith.constant 0 : index
    %c32_27 = arith.constant 32 : index
    %84 = vector.load %arg7[%c6, %c0_26, %c32_27] : memref<8x2x64xf32, #tpu.memory_space<vmem>>, vector<1x2x32xf32>
    %85 = vector.shape_cast %84 : vector<1x2x32xf32> to vector<2x32xf32>
    %86 = vector.shape_cast %83 : vector<2x32xf32> to vector<1x2x32xf32>
    tpu.vector_store %arg7[%c6, %c0_26, %c32_27], %86 {strides = array<i32>} : memref<8x2x64xf32, #tpu.memory_space<vmem>>, vector<1x2x32xf32>,
    %87 = vector.extract_strided_slice %5 {offsets = [4, 0], sizes = [2, 256], strides = [1, 1]} : vector<16x256xf32> to vector<2x256xf32>
    %88 = vector.extract_strided_slice %7 {offsets = [10, 0], sizes = [2, 256], strides = [1, 1]} : vector<16x256xf32> to vector<2x256xf32>
    %89 = arith.addf %87, %88 : vector<2x256xf32>
    %cst_28 = arith.constant dense<0.000000e+00> : vector<2x256xf32>
    %90 = tpu.matmul %78, %8, %cst_28 {dimension_numbers = #tpu.dot_dimension_numbers<[1], [0], [0], [1], [0, 0, 1, 1], [], []>} : vector<2x64xf32>, vector<64x256xf32>, vector<2x256xf32> -> vector<2x256xf32>
    %91 = arith.addf %89, %90 : vector<2x256xf32>
    %92 = vector.extract_strided_slice %91 {offsets = [0, 0], sizes = [2, 64], strides = [1, 1]} : vector<2x256xf32> to vector<2x64xf32>
    %93 = arith.negf %92 : vector<2x64xf32>
    %94 = math.exp %93 : vector<2x64xf32>
    %cst_29 = arith.constant 1.000000e+00 : f32
    %95 = vector.broadcast %cst_29 : f32 to vector<2x64xf32>
    %96 = arith.addf %95, %94 : vector<2x64xf32>
    %97 = arith.divf %95, %96 : vector<2x64xf32>
    %98 = vector.extract_strided_slice %91 {offsets = [0, 64], sizes = [2, 64], strides = [1, 1]} : vector<2x256xf32> to vector<2x64xf32>
    %99 = arith.negf %98 : vector<2x64xf32>
    %100 = math.exp %99 : vector<2x64xf32>
    %cst_30 = arith.constant 1.000000e+00 : f32
    %101 = vector.broadcast %cst_30 : f32 to vector<2x64xf32>
    %102 = arith.addf %101, %100 : vector<2x64xf32>
    %103 = arith.divf %101, %102 : vector<2x64xf32>
    %104 = vector.extract_strided_slice %91 {offsets = [0, 128], sizes = [2, 64], strides = [1, 1]} : vector<2x256xf32> to vector<2x64xf32>
    %105 = math.tanh %104 : vector<2x64xf32>
    %106 = vector.extract_strided_slice %91 {offsets = [0, 192], sizes = [2, 64], strides = [1, 1]} : vector<2x256xf32> to vector<2x64xf32>
    %107 = arith.negf %106 : vector<2x64xf32>
    %108 = math.exp %107 : vector<2x64xf32>
    %cst_31 = arith.constant 1.000000e+00 : f32
    %109 = vector.broadcast %cst_31 : f32 to vector<2x64xf32>
    %110 = arith.addf %109, %108 : vector<2x64xf32>
    %111 = arith.divf %109, %110 : vector<2x64xf32>
    %112 = arith.mulf %103, %76 : vector<2x64xf32>
    %113 = arith.mulf %97, %105 : vector<2x64xf32>
    %114 = arith.addf %112, %113 : vector<2x64xf32>
    %115 = math.tanh %114 : vector<2x64xf32>
    %116 = arith.mulf %111, %115 : vector<2x64xf32>
    %117 = vector.extract_strided_slice %116 {offsets = [0, 0], sizes = [2, 32], strides = [1, 1]} : vector<2x64xf32> to vector<2x32xf32>
    %c2 = arith.constant 2 : index
    %c0_32 = arith.constant 0 : index
    %c0_33 = arith.constant 0 : index
    %118 = vector.load %arg7[%c2, %c0_32, %c0_33] : memref<8x2x64xf32, #tpu.memory_space<vmem>>, vector<1x2x32xf32>
    %119 = vector.shape_cast %118 : vector<1x2x32xf32> to vector<2x32xf32>
    %120 = vector.shape_cast %117 : vector<2x32xf32> to vector<1x2x32xf32>
    tpu.vector_store %arg7[%c2, %c0_32, %c0_33], %120 {strides = array<i32>} : memref<8x2x64xf32, #tpu.memory_space<vmem>>, vector<1x2x32xf32>,
    %121 = vector.extract_strided_slice %116 {offsets = [0, 32], sizes = [2, 32], strides = [1, 1]} : vector<2x64xf32> to vector<2x32xf32>
    %c5 = arith.constant 5 : index
    %c0_34 = arith.constant 0 : index
    %c32_35 = arith.constant 32 : index
    %122 = vector.load %arg7[%c5, %c0_34, %c32_35] : memref<8x2x64xf32, #tpu.memory_space<vmem>>, vector<1x2x32xf32>
    %123 = vector.shape_cast %122 : vector<1x2x32xf32> to vector<2x32xf32>
    %124 = vector.shape_cast %121 : vector<2x32xf32> to vector<1x2x32xf32>
    tpu.vector_store %arg7[%c5, %c0_34, %c32_35], %124 {strides = array<i32>} : memref<8x2x64xf32, #tpu.memory_space<vmem>>, vector<1x2x32xf32>,
    %125 = vector.extract_strided_slice %5 {offsets = [6, 0], sizes = [2, 256], strides = [1, 1]} : vector<16x256xf32> to vector<2x256xf32>
    %126 = vector.extract_strided_slice %7 {offsets = [8, 0], sizes = [2, 256], strides = [1, 1]} : vector<16x256xf32> to vector<2x256xf32>
    %127 = arith.addf %125, %126 : vector<2x256xf32>
    %cst_36 = arith.constant dense<0.000000e+00> : vector<2x256xf32>
    %128 = tpu.matmul %116, %8, %cst_36 {dimension_numbers = #tpu.dot_dimension_numbers<[1], [0], [0], [1], [0, 0, 1, 1], [], []>} : vector<2x64xf32>, vector<64x256xf32>, vector<2x256xf32> -> vector<2x256xf32>
    %129 = arith.addf %127, %128 : vector<2x256xf32>
    %130 = vector.extract_strided_slice %129 {offsets = [0, 0], sizes = [2, 64], strides = [1, 1]} : vector<2x256xf32> to vector<2x64xf32>
    %131 = arith.negf %130 : vector<2x64xf32>
    %132 = math.exp %131 : vector<2x64xf32>
    %cst_37 = arith.constant 1.000000e+00 : f32
    %133 = vector.broadcast %cst_37 : f32 to vector<2x64xf32>
    %134 = arith.addf %133, %132 : vector<2x64xf32>
    %135 = arith.divf %133, %134 : vector<2x64xf32>
    %136 = vector.extract_strided_slice %129 {offsets = [0, 64], sizes = [2, 64], strides = [1, 1]} : vector<2x256xf32> to vector<2x64xf32>
    %137 = arith.negf %136 : vector<2x64xf32>
    %138 = math.exp %137 : vector<2x64xf32>
    %cst_38 = arith.constant 1.000000e+00 : f32
    %139 = vector.broadcast %cst_38 : f32 to vector<2x64xf32>
    %140 = arith.addf %139, %138 : vector<2x64xf32>
    %141 = arith.divf %139, %140 : vector<2x64xf32>
    %142 = vector.extract_strided_slice %129 {offsets = [0, 128], sizes = [2, 64], strides = [1, 1]} : vector<2x256xf32> to vector<2x64xf32>
    %143 = math.tanh %142 : vector<2x64xf32>
    %144 = vector.extract_strided_slice %129 {offsets = [0, 192], sizes = [2, 64], strides = [1, 1]} : vector<2x256xf32> to vector<2x64xf32>
    %145 = arith.negf %144 : vector<2x64xf32>
    %146 = math.exp %145 : vector<2x64xf32>
    %cst_39 = arith.constant 1.000000e+00 : f32
    %147 = vector.broadcast %cst_39 : f32 to vector<2x64xf32>
    %148 = arith.addf %147, %146 : vector<2x64xf32>
    %149 = arith.divf %147, %148 : vector<2x64xf32>
    %150 = arith.mulf %141, %114 : vector<2x64xf32>
    %151 = arith.mulf %135, %143 : vector<2x64xf32>
    %152 = arith.addf %150, %151 : vector<2x64xf32>
    %153 = math.tanh %152 : vector<2x64xf32>
    %154 = arith.mulf %149, %153 : vector<2x64xf32>
    %155 = vector.extract_strided_slice %154 {offsets = [0, 0], sizes = [2, 32], strides = [1, 1]} : vector<2x64xf32> to vector<2x32xf32>
    %c3 = arith.constant 3 : index
    %c0_40 = arith.constant 0 : index
    %c0_41 = arith.constant 0 : index
    %156 = vector.load %arg7[%c3, %c0_40, %c0_41] : memref<8x2x64xf32, #tpu.memory_space<vmem>>, vector<1x2x32xf32>
    %157 = vector.shape_cast %156 : vector<1x2x32xf32> to vector<2x32xf32>
    %158 = vector.shape_cast %155 : vector<2x32xf32> to vector<1x2x32xf32>
    tpu.vector_store %arg7[%c3, %c0_40, %c0_41], %158 {strides = array<i32>} : memref<8x2x64xf32, #tpu.memory_space<vmem>>, vector<1x2x32xf32>,
    %159 = vector.extract_strided_slice %154 {offsets = [0, 32], sizes = [2, 32], strides = [1, 1]} : vector<2x64xf32> to vector<2x32xf32>
    %c4 = arith.constant 4 : index
    %c0_42 = arith.constant 0 : index
    %c32_43 = arith.constant 32 : index
    %160 = vector.load %arg7[%c4, %c0_42, %c32_43] : memref<8x2x64xf32, #tpu.memory_space<vmem>>, vector<1x2x32xf32>
    %161 = vector.shape_cast %160 : vector<1x2x32xf32> to vector<2x32xf32>
    %162 = vector.shape_cast %159 : vector<2x32xf32> to vector<1x2x32xf32>
    tpu.vector_store %arg7[%c4, %c0_42, %c32_43], %162 {strides = array<i32>} : memref<8x2x64xf32, #tpu.memory_space<vmem>>, vector<1x2x32xf32>,
    %163 = vector.extract_strided_slice %5 {offsets = [8, 0], sizes = [2, 256], strides = [1, 1]} : vector<16x256xf32> to vector<2x256xf32>
    %164 = vector.extract_strided_slice %7 {offsets = [6, 0], sizes = [2, 256], strides = [1, 1]} : vector<16x256xf32> to vector<2x256xf32>
    %165 = arith.addf %163, %164 : vector<2x256xf32>
    %cst_44 = arith.constant dense<0.000000e+00> : vector<2x256xf32>
    %166 = tpu.matmul %154, %8, %cst_44 {dimension_numbers = #tpu.dot_dimension_numbers<[1], [0], [0], [1], [0, 0, 1, 1], [], []>} : vector<2x64xf32>, vector<64x256xf32>, vector<2x256xf32> -> vector<2x256xf32>
    %167 = arith.addf %165, %166 : vector<2x256xf32>
    %168 = vector.extract_strided_slice %167 {offsets = [0, 0], sizes = [2, 64], strides = [1, 1]} : vector<2x256xf32> to vector<2x64xf32>
    %169 = arith.negf %168 : vector<2x64xf32>
    %170 = math.exp %169 : vector<2x64xf32>
    %cst_45 = arith.constant 1.000000e+00 : f32
    %171 = vector.broadcast %cst_45 : f32 to vector<2x64xf32>
    %172 = arith.addf %171, %170 : vector<2x64xf32>
    %173 = arith.divf %171, %172 : vector<2x64xf32>
    %174 = vector.extract_strided_slice %167 {offsets = [0, 64], sizes = [2, 64], strides = [1, 1]} : vector<2x256xf32> to vector<2x64xf32>
    %175 = arith.negf %174 : vector<2x64xf32>
    %176 = math.exp %175 : vector<2x64xf32>
    %cst_46 = arith.constant 1.000000e+00 : f32
    %177 = vector.broadcast %cst_46 : f32 to vector<2x64xf32>
    %178 = arith.addf %177, %176 : vector<2x64xf32>
    %179 = arith.divf %177, %178 : vector<2x64xf32>
    %180 = vector.extract_strided_slice %167 {offsets = [0, 128], sizes = [2, 64], strides = [1, 1]} : vector<2x256xf32> to vector<2x64xf32>
    %181 = math.tanh %180 : vector<2x64xf32>
    %182 = vector.extract_strided_slice %167 {offsets = [0, 192], sizes = [2, 64], strides = [1, 1]} : vector<2x256xf32> to vector<2x64xf32>
    %183 = arith.negf %182 : vector<2x64xf32>
    %184 = math.exp %183 : vector<2x64xf32>
    %cst_47 = arith.constant 1.000000e+00 : f32
    %185 = vector.broadcast %cst_47 : f32 to vector<2x64xf32>
    %186 = arith.addf %185, %184 : vector<2x64xf32>
    %187 = arith.divf %185, %186 : vector<2x64xf32>
    %188 = arith.mulf %179, %152 : vector<2x64xf32>
    %189 = arith.mulf %173, %181 : vector<2x64xf32>
    %190 = arith.addf %188, %189 : vector<2x64xf32>
    %191 = math.tanh %190 : vector<2x64xf32>
    %192 = arith.mulf %187, %191 : vector<2x64xf32>
    %193 = vector.extract_strided_slice %192 {offsets = [0, 0], sizes = [2, 32], strides = [1, 1]} : vector<2x64xf32> to vector<2x32xf32>
    %c4_48 = arith.constant 4 : index
    %c0_49 = arith.constant 0 : index
    %c0_50 = arith.constant 0 : index
    %194 = vector.load %arg7[%c4_48, %c0_49, %c0_50] : memref<8x2x64xf32, #tpu.memory_space<vmem>>, vector<1x2x32xf32>
    %195 = vector.shape_cast %194 : vector<1x2x32xf32> to vector<2x32xf32>
    %196 = vector.shape_cast %193 : vector<2x32xf32> to vector<1x2x32xf32>
    tpu.vector_store %arg7[%c4_48, %c0_49, %c0_50], %196 {strides = array<i32>} : memref<8x2x64xf32, #tpu.memory_space<vmem>>, vector<1x2x32xf32>,
    %197 = vector.extract_strided_slice %192 {offsets = [0, 32], sizes = [2, 32], strides = [1, 1]} : vector<2x64xf32> to vector<2x32xf32>
    %c3_51 = arith.constant 3 : index
    %c0_52 = arith.constant 0 : index
    %c32_53 = arith.constant 32 : index
    %198 = vector.load %arg7[%c3_51, %c0_52, %c32_53] : memref<8x2x64xf32, #tpu.memory_space<vmem>>, vector<1x2x32xf32>
    %199 = vector.shape_cast %198 : vector<1x2x32xf32> to vector<2x32xf32>
    %200 = vector.shape_cast %197 : vector<2x32xf32> to vector<1x2x32xf32>
    tpu.vector_store %arg7[%c3_51, %c0_52, %c32_53], %200 {strides = array<i32>} : memref<8x2x64xf32, #tpu.memory_space<vmem>>, vector<1x2x32xf32>,
    %201 = vector.extract_strided_slice %5 {offsets = [10, 0], sizes = [2, 256], strides = [1, 1]} : vector<16x256xf32> to vector<2x256xf32>
    %202 = vector.extract_strided_slice %7 {offsets = [4, 0], sizes = [2, 256], strides = [1, 1]} : vector<16x256xf32> to vector<2x256xf32>
    %203 = arith.addf %201, %202 : vector<2x256xf32>
    %cst_54 = arith.constant dense<0.000000e+00> : vector<2x256xf32>
    %204 = tpu.matmul %192, %8, %cst_54 {dimension_numbers = #tpu.dot_dimension_numbers<[1], [0], [0], [1], [0, 0, 1, 1], [], []>} : vector<2x64xf32>, vector<64x256xf32>, vector<2x256xf32> -> vector<2x256xf32>
    %205 = arith.addf %203, %204 : vector<2x256xf32>
    %206 = vector.extract_strided_slice %205 {offsets = [0, 0], sizes = [2, 64], strides = [1, 1]} : vector<2x256xf32> to vector<2x64xf32>
    %207 = arith.negf %206 : vector<2x64xf32>
    %208 = math.exp %207 : vector<2x64xf32>
    %cst_55 = arith.constant 1.000000e+00 : f32
    %209 = vector.broadcast %cst_55 : f32 to vector<2x64xf32>
    %210 = arith.addf %209, %208 : vector<2x64xf32>
    %211 = arith.divf %209, %210 : vector<2x64xf32>
    %212 = vector.extract_strided_slice %205 {offsets = [0, 64], sizes = [2, 64], strides = [1, 1]} : vector<2x256xf32> to vector<2x64xf32>
    %213 = arith.negf %212 : vector<2x64xf32>
    %214 = math.exp %213 : vector<2x64xf32>
    %cst_56 = arith.constant 1.000000e+00 : f32
    %215 = vector.broadcast %cst_56 : f32 to vector<2x64xf32>
    %216 = arith.addf %215, %214 : vector<2x64xf32>
    %217 = arith.divf %215, %216 : vector<2x64xf32>
    %218 = vector.extract_strided_slice %205 {offsets = [0, 128], sizes = [2, 64], strides = [1, 1]} : vector<2x256xf32> to vector<2x64xf32>
    %219 = math.tanh %218 : vector<2x64xf32>
    %220 = vector.extract_strided_slice %205 {offsets = [0, 192], sizes = [2, 64], strides = [1, 1]} : vector<2x256xf32> to vector<2x64xf32>
    %221 = arith.negf %220 : vector<2x64xf32>
    %222 = math.exp %221 : vector<2x64xf32>
    %cst_57 = arith.constant 1.000000e+00 : f32
    %223 = vector.broadcast %cst_57 : f32 to vector<2x64xf32>
    %224 = arith.addf %223, %222 : vector<2x64xf32>
    %225 = arith.divf %223, %224 : vector<2x64xf32>
    %226 = arith.mulf %217, %190 : vector<2x64xf32>
    %227 = arith.mulf %211, %219 : vector<2x64xf32>
    %228 = arith.addf %226, %227 : vector<2x64xf32>
    %229 = math.tanh %228 : vector<2x64xf32>
    %230 = arith.mulf %225, %229 : vector<2x64xf32>
    %231 = vector.extract_strided_slice %230 {offsets = [0, 0], sizes = [2, 32], strides = [1, 1]} : vector<2x64xf32> to vector<2x32xf32>
    %c5_58 = arith.constant 5 : index
    %c0_59 = arith.constant 0 : index
    %c0_60 = arith.constant 0 : index
    %232 = vector.load %arg7[%c5_58, %c0_59, %c0_60] : memref<8x2x64xf32, #tpu.memory_space<vmem>>, vector<1x2x32xf32>
    %233 = vector.shape_cast %232 : vector<1x2x32xf32> to vector<2x32xf32>
    %234 = vector.shape_cast %231 : vector<2x32xf32> to vector<1x2x32xf32>
    tpu.vector_store %arg7[%c5_58, %c0_59, %c0_60], %234 {strides = array<i32>} : memref<8x2x64xf32, #tpu.memory_space<vmem>>, vector<1x2x32xf32>,
    %235 = vector.extract_strided_slice %230 {offsets = [0, 32], sizes = [2, 32], strides = [1, 1]} : vector<2x64xf32> to vector<2x32xf32>
    %c2_61 = arith.constant 2 : index
    %c0_62 = arith.constant 0 : index
    %c32_63 = arith.constant 32 : index
    %236 = vector.load %arg7[%c2_61, %c0_62, %c32_63] : memref<8x2x64xf32, #tpu.memory_space<vmem>>, vector<1x2x32xf32>
    %237 = vector.shape_cast %236 : vector<1x2x32xf32> to vector<2x32xf32>
    %238 = vector.shape_cast %235 : vector<2x32xf32> to vector<1x2x32xf32>
    tpu.vector_store %arg7[%c2_61, %c0_62, %c32_63], %238 {strides = array<i32>} : memref<8x2x64xf32, #tpu.memory_space<vmem>>, vector<1x2x32xf32>,
    %239 = vector.extract_strided_slice %5 {offsets = [12, 0], sizes = [2, 256], strides = [1, 1]} : vector<16x256xf32> to vector<2x256xf32>
    %240 = vector.extract_strided_slice %7 {offsets = [2, 0], sizes = [2, 256], strides = [1, 1]} : vector<16x256xf32> to vector<2x256xf32>
    %241 = arith.addf %239, %240 : vector<2x256xf32>
    %cst_64 = arith.constant dense<0.000000e+00> : vector<2x256xf32>
    %242 = tpu.matmul %230, %8, %cst_64 {dimension_numbers = #tpu.dot_dimension_numbers<[1], [0], [0], [1], [0, 0, 1, 1], [], []>} : vector<2x64xf32>, vector<64x256xf32>, vector<2x256xf32> -> vector<2x256xf32>
    %243 = arith.addf %241, %242 : vector<2x256xf32>
    %244 = vector.extract_strided_slice %243 {offsets = [0, 0], sizes = [2, 64], strides = [1, 1]} : vector<2x256xf32> to vector<2x64xf32>
    %245 = arith.negf %244 : vector<2x64xf32>
    %246 = math.exp %245 : vector<2x64xf32>
    %cst_65 = arith.constant 1.000000e+00 : f32
    %247 = vector.broadcast %cst_65 : f32 to vector<2x64xf32>
    %248 = arith.addf %247, %246 : vector<2x64xf32>
    %249 = arith.divf %247, %248 : vector<2x64xf32>
    %250 = vector.extract_strided_slice %243 {offsets = [0, 64], sizes = [2, 64], strides = [1, 1]} : vector<2x256xf32> to vector<2x64xf32>
    %251 = arith.negf %250 : vector<2x64xf32>
    %252 = math.exp %251 : vector<2x64xf32>
    %cst_66 = arith.constant 1.000000e+00 : f32
    %253 = vector.broadcast %cst_66 : f32 to vector<2x64xf32>
    %254 = arith.addf %253, %252 : vector<2x64xf32>
    %255 = arith.divf %253, %254 : vector<2x64xf32>
    %256 = vector.extract_strided_slice %243 {offsets = [0, 128], sizes = [2, 64], strides = [1, 1]} : vector<2x256xf32> to vector<2x64xf32>
    %257 = math.tanh %256 : vector<2x64xf32>
    %258 = vector.extract_strided_slice %243 {offsets = [0, 192], sizes = [2, 64], strides = [1, 1]} : vector<2x256xf32> to vector<2x64xf32>
    %259 = arith.negf %258 : vector<2x64xf32>
    %260 = math.exp %259 : vector<2x64xf32>
    %cst_67 = arith.constant 1.000000e+00 : f32
    %261 = vector.broadcast %cst_67 : f32 to vector<2x64xf32>
    %262 = arith.addf %261, %260 : vector<2x64xf32>
    %263 = arith.divf %261, %262 : vector<2x64xf32>
    %264 = arith.mulf %255, %228 : vector<2x64xf32>
    %265 = arith.mulf %249, %257 : vector<2x64xf32>
    %266 = arith.addf %264, %265 : vector<2x64xf32>
    %267 = math.tanh %266 : vector<2x64xf32>
    %268 = arith.mulf %263, %267 : vector<2x64xf32>
    %269 = vector.extract_strided_slice %268 {offsets = [0, 0], sizes = [2, 32], strides = [1, 1]} : vector<2x64xf32> to vector<2x32xf32>
    %c6_68 = arith.constant 6 : index
    %c0_69 = arith.constant 0 : index
    %c0_70 = arith.constant 0 : index
    %270 = vector.load %arg7[%c6_68, %c0_69, %c0_70] : memref<8x2x64xf32, #tpu.memory_space<vmem>>, vector<1x2x32xf32>
    %271 = vector.shape_cast %270 : vector<1x2x32xf32> to vector<2x32xf32>
    %272 = vector.shape_cast %269 : vector<2x32xf32> to vector<1x2x32xf32>
    tpu.vector_store %arg7[%c6_68, %c0_69, %c0_70], %272 {strides = array<i32>} : memref<8x2x64xf32, #tpu.memory_space<vmem>>, vector<1x2x32xf32>,
    %273 = vector.extract_strided_slice %268 {offsets = [0, 32], sizes = [2, 32], strides = [1, 1]} : vector<2x64xf32> to vector<2x32xf32>
    %c1_71 = arith.constant 1 : index
    %c0_72 = arith.constant 0 : index
    %c32_73 = arith.constant 32 : index
    %274 = vector.load %arg7[%c1_71, %c0_72, %c32_73] : memref<8x2x64xf32, #tpu.memory_space<vmem>>, vector<1x2x32xf32>
    %275 = vector.shape_cast %274 : vector<1x2x32xf32> to vector<2x32xf32>
    %276 = vector.shape_cast %273 : vector<2x32xf32> to vector<1x2x32xf32>
    tpu.vector_store %arg7[%c1_71, %c0_72, %c32_73], %276 {strides = array<i32>} : memref<8x2x64xf32, #tpu.memory_space<vmem>>, vector<1x2x32xf32>,
    %277 = vector.extract_strided_slice %5 {offsets = [14, 0], sizes = [2, 256], strides = [1, 1]} : vector<16x256xf32> to vector<2x256xf32>
    %278 = vector.extract_strided_slice %7 {offsets = [0, 0], sizes = [2, 256], strides = [1, 1]} : vector<16x256xf32> to vector<2x256xf32>
    %279 = arith.addf %277, %278 : vector<2x256xf32>
    %cst_74 = arith.constant dense<0.000000e+00> : vector<2x256xf32>
    %280 = tpu.matmul %268, %8, %cst_74 {dimension_numbers = #tpu.dot_dimension_numbers<[1], [0], [0], [1], [0, 0, 1, 1], [], []>} : vector<2x64xf32>, vector<64x256xf32>, vector<2x256xf32> -> vector<2x256xf32>
    %281 = arith.addf %279, %280 : vector<2x256xf32>
    %282 = vector.extract_strided_slice %281 {offsets = [0, 0], sizes = [2, 64], strides = [1, 1]} : vector<2x256xf32> to vector<2x64xf32>
    %283 = arith.negf %282 : vector<2x64xf32>
    %284 = math.exp %283 : vector<2x64xf32>
    %cst_75 = arith.constant 1.000000e+00 : f32
    %285 = vector.broadcast %cst_75 : f32 to vector<2x64xf32>
    %286 = arith.addf %285, %284 : vector<2x64xf32>
    %287 = arith.divf %285, %286 : vector<2x64xf32>
    %288 = vector.extract_strided_slice %281 {offsets = [0, 64], sizes = [2, 64], strides = [1, 1]} : vector<2x256xf32> to vector<2x64xf32>
    %289 = arith.negf %288 : vector<2x64xf32>
    %290 = math.exp %289 : vector<2x64xf32>
    %cst_76 = arith.constant 1.000000e+00 : f32
    %291 = vector.broadcast %cst_76 : f32 to vector<2x64xf32>
    %292 = arith.addf %291, %290 : vector<2x64xf32>
    %293 = arith.divf %291, %292 : vector<2x64xf32>
    %294 = vector.extract_strided_slice %281 {offsets = [0, 128], sizes = [2, 64], strides = [1, 1]} : vector<2x256xf32> to vector<2x64xf32>
    %295 = math.tanh %294 : vector<2x64xf32>
    %296 = vector.extract_strided_slice %281 {offsets = [0, 192], sizes = [2, 64], strides = [1, 1]} : vector<2x256xf32> to vector<2x64xf32>
    %297 = arith.negf %296 : vector<2x64xf32>
    %298 = math.exp %297 : vector<2x64xf32>
    %cst_77 = arith.constant 1.000000e+00 : f32
    %299 = vector.broadcast %cst_77 : f32 to vector<2x64xf32>
    %300 = arith.addf %299, %298 : vector<2x64xf32>
    %301 = arith.divf %299, %300 : vector<2x64xf32>
    %302 = arith.mulf %293, %266 : vector<2x64xf32>
    %303 = arith.mulf %287, %295 : vector<2x64xf32>
    %304 = arith.addf %302, %303 : vector<2x64xf32>
    %305 = math.tanh %304 : vector<2x64xf32>
    %306 = arith.mulf %301, %305 : vector<2x64xf32>
    %307 = vector.extract_strided_slice %306 {offsets = [0, 0], sizes = [2, 32], strides = [1, 1]} : vector<2x64xf32> to vector<2x32xf32>
    %c7_78 = arith.constant 7 : index
    %c0_79 = arith.constant 0 : index
    %c0_80 = arith.constant 0 : index
    %308 = vector.load %arg7[%c7_78, %c0_79, %c0_80] : memref<8x2x64xf32, #tpu.memory_space<vmem>>, vector<1x2x32xf32>
    %309 = vector.shape_cast %308 : vector<1x2x32xf32> to vector<2x32xf32>
    %310 = vector.shape_cast %307 : vector<2x32xf32> to vector<1x2x32xf32>
    tpu.vector_store %arg7[%c7_78, %c0_79, %c0_80], %310 {strides = array<i32>} : memref<8x2x64xf32, #tpu.memory_space<vmem>>, vector<1x2x32xf32>,
    %311 = vector.extract_strided_slice %306 {offsets = [0, 32], sizes = [2, 32], strides = [1, 1]} : vector<2x64xf32> to vector<2x32xf32>
    %c0_81 = arith.constant 0 : index
    %c0_82 = arith.constant 0 : index
    %c32_83 = arith.constant 32 : index
    %312 = vector.load %arg7[%c0_81, %c0_82, %c32_83] : memref<8x2x64xf32, #tpu.memory_space<vmem>>, vector<1x2x32xf32>
    %313 = vector.shape_cast %312 : vector<1x2x32xf32> to vector<2x32xf32>
    %314 = vector.shape_cast %311 : vector<2x32xf32> to vector<1x2x32xf32>
    tpu.vector_store %arg7[%c0_81, %c0_82, %c32_83], %314 {strides = array<i32>} : memref<8x2x64xf32, #tpu.memory_space<vmem>>, vector<1x2x32xf32>,
    %315 = tpu.concatenate %306, %304 in 1 : vector<2x64xf32>, vector<2x64xf32> -> vector<2x128xf32>
    %c0_84 = arith.constant 0 : index
    %c0_85 = arith.constant 0 : index
    %316 = vector.load %arg5[%c0_84, %c0_85] : memref<128x64xf32, #tpu.memory_space<vmem>>, vector<128x64xf32>
    %cst_86 = arith.constant dense<0.000000e+00> : vector<2x64xf32>
    %317 = tpu.matmul %315, %316, %cst_86 {dimension_numbers = #tpu.dot_dimension_numbers<[1], [0], [0], [1], [0, 0, 1, 1], [], []>} : vector<2x128xf32>, vector<128x64xf32>, vector<2x64xf32> -> vector<2x64xf32>
    %c0_87 = arith.constant 0 : index
    %c0_88 = arith.constant 0 : index
    %318 = vector.load %arg6[%c0_87, %c0_88] : memref<1x64xf32, #tpu.memory_space<vmem>>, vector<1x64xf32>
    %319 = vector.broadcast %318 : vector<1x64xf32> to vector<2x64xf32>
    %320 = arith.addf %317, %319 : vector<2x64xf32>
    %321 = vector.extract_strided_slice %320 {offsets = [0, 0], sizes = [2, 32], strides = [1, 1]} : vector<2x64xf32> to vector<2x32xf32>
    %c0_89 = arith.constant 0 : index
    %c0_90 = arith.constant 0 : index
    %c0_91 = arith.constant 0 : index
    %322 = vector.load %arg8[%c0_89, %c0_90, %c0_91] : memref<1x2x32xf32, #tpu.memory_space<vmem>>, vector<1x2x32xf32>
    %323 = vector.shape_cast %322 : vector<1x2x32xf32> to vector<2x32xf32>
    %324 = vector.shape_cast %321 : vector<2x32xf32> to vector<1x2x32xf32>
    tpu.vector_store %arg8[%c0_89, %c0_90, %c0_91], %324 {strides = array<i32>} : memref<1x2x32xf32, #tpu.memory_space<vmem>>, vector<1x2x32xf32>,
    %325 = vector.extract_strided_slice %320 {offsets = [0, 32], sizes = [2, 32], strides = [1, 1]} : vector<2x64xf32> to vector<2x32xf32>
    %c0_92 = arith.constant 0 : index
    %c0_93 = arith.constant 0 : index
    %c0_94 = arith.constant 0 : index
    %326 = vector.load %arg9[%c0_92, %c0_93, %c0_94] : memref<1x2x32xf32, #tpu.memory_space<vmem>>, vector<1x2x32xf32>
    %327 = vector.shape_cast %326 : vector<1x2x32xf32> to vector<2x32xf32>
    %328 = vector.shape_cast %325 : vector<2x32xf32> to vector<1x2x32xf32>
    tpu.vector_store %arg9[%c0_92, %c0_93, %c0_94], %328 {strides = array<i32>} : memref<1x2x32xf32, #tpu.memory_space<vmem>>, vector<1x2x32xf32>,
    return
  }
}

</mosaic_0001>

<llo_original>
// kernel: encoder_forward.1
$region0: #{encoder_forward.1}
  #allocation0 [shape = 'u32[]', space=smem, size = 0x4, offset = 0x4, fixed_abs, tag = 'smem constant byte address 0x4 - core index']
  #allocation1 [shape = 'u32[72,128]{1,0:T(1,128)}', space=vmem, size = 0x9000, scoped, tag = 'internal scratch']
  %s0 = inlined_call_operand.vmem [shape: f32[16,4], index: 0, kind: input, shape index: {}]
  %s1 = inlined_call_operand.vmem [shape: f32[4,256], index: 1, kind: input, shape index: {}]
  %s2 = inlined_call_operand.vmem [shape: f32[4,256], index: 2, kind: input, shape index: {}]
  %s3 = inlined_call_operand.vmem [shape: f32[1,256], index: 3, kind: input, shape index: {}]
  %s4 = inlined_call_operand.vmem [shape: f32[64,256], index: 4, kind: input, shape index: {}]
  %s5 = inlined_call_operand.vmem [shape: f32[128,64], index: 5, kind: input, shape index: {}]
  %s6 = inlined_call_operand.vmem [shape: f32[1,64], index: 6, kind: input, shape index: {}]
  %s7 = inlined_call_operand.hbm [shape: f32[8,2,64], index: 7, kind: output, shape index: {0}]
  %s8 = inlined_call_operand.hbm [shape: f32[1,2,32], index: 8, kind: output, shape index: {1}]
  %s9 = inlined_call_operand.hbm [shape: f32[1,2,32], index: 9, kind: output, shape index: {2}]
  %10 = xla_tuple %s7, %s8, %s9
  %s11 = sld [smem:[#allocation0]]
  $region54: #{encoder_forward.1} parent=0
    _
  %s13 = ssub.s32 1, %s11
  %s14 = scalar_select 0, %s13, %s11
  $region1: #{encoder_forward.1} parent=0
    #allocation2 [shape = 'u8[8192]{0}', space=vmem, size = 0x2000, scoped, tag = 'output window, operand 0, single buffered']
    #allocation3 [shape = 's32[1]{0}', space=sflag, size = 0x4, scoped, tag = 'scoped memory for encoder_forward.1']
    #allocation4 [shape = 'u8[1024]{0}', space=vmem, size = 0x400, scoped, tag = 'output window, operand 1, single buffered']
    #allocation5 [shape = 's32[1]{0}', space=sflag, size = 0x4, scoped, tag = 'scoped memory for encoder_forward.1']
    #allocation6 [shape = 'u8[1024]{0}', space=vmem, size = 0x400, scoped, tag = 'output window, operand 2, single buffered']
    %15 = vsyncpa [#allocation3], 0
    %16 = vsyncpa [#allocation5], 0
    // Predicated region
    $region2: #{encoder_forward.1} parent=1 // pred_check
      _
    $region3: #{encoder_forward.1} parent=1 // pred_check_branch
      %18 = sbr.rel (0) target = $region5
    $region4: #{encoder_forward.1} parent=1 // pred_region
      _
    $region5: #{encoder_forward.1} parent=1 // pred_fallthru
      _
    // Predicated region
    $region6: #{encoder_forward.1} parent=1 // pred_check
      _
    $region7: #{encoder_forward.1} parent=1 // pred_check_branch
      %20 = sbr.rel (0) target = $region9
    $region8: #{encoder_forward.1} parent=1 // pred_region
      _
    $region9: #{encoder_forward.1} parent=1 // pred_fallthru
      _
    // Predicated region
    $region10: #{encoder_forward.1} parent=1 // pred_check
      _
    $region11: #{encoder_forward.1} parent=1 // pred_check_branch
      %22 = sbr.rel (0) target = $region13
    $region12: #{encoder_forward.1} parent=1 // pred_region
      _
    $region13: #{encoder_forward.1} parent=1 // pred_fallthru
      _
    // Predicated region
    $region14: #{encoder_forward.1} parent=1 // pred_check
      _
    $region15: #{encoder_forward.1} parent=1 // pred_check_branch
      %24 = sbr.rel (0) target = $region17
    $region16: #{encoder_forward.1} parent=1 // pred_region
      _
    $region17: #{encoder_forward.1} parent=1 // pred_fallthru
      _
    // Predicated region
    $region18: #{encoder_forward.1} parent=1 // pred_check
      _
    $region19: #{encoder_forward.1} parent=1 // pred_check_branch
      %26 = sbr.rel (0) target = $region21
    $region20: #{encoder_forward.1} parent=1 // pred_region
      _
    $region21: #{encoder_forward.1} parent=1 // pred_fallthru
      _
    // Predicated region
    $region22: #{encoder_forward.1} parent=1 // pred_check
      _
    $region23: #{encoder_forward.1} parent=1 // pred_check_branch
      %28 = sbr.rel (0) target = $region25
    $region24: #{encoder_forward.1} parent=1 // pred_region
      _
    $region25: #{encoder_forward.1} parent=1 // pred_fallthru
      _
    // Predicated region
    $region26: #{encoder_forward.1} parent=1 // pred_check
      _
    $region27: #{encoder_forward.1} parent=1 // pred_check_branch
      %30 = sbr.rel (0) target = $region29
    $region28: #{encoder_forward.1} parent=1 // pred_region
      _
    $region29: #{encoder_forward.1} parent=1 // pred_fallthru
      _
    %v31 = vld [vmem:[%s0] sm:$0xff]
    %v32 = vld [vmem:[%s0 + $0x8] sm:$0xff]
    %v33 = vld [vmem:[%s1] sm:$0xff]
    %v34 = vld [vmem:[%s3] sm:$0x3]
    %v36 = vperm.slane %v34, 0
    %v37 = vperm.slane %v34, 1
    %41 = vst [vmem:[#allocation1] ss:$2 sm:$0xff] %v33
    %v42 = vld.sshfl [vmem:[#allocation1] sm:$0xff pattern:$0x75316420]
    %v43 = vld.sshfl [vmem:[#allocation1 + $0x8] sm:$0xff pattern:$0x75316420]
    %vm44 = vcmask 31744
    %v46 = vsel %vm44, %v31, 0
    %v49 = vsel %vm44, %v32, 0
    %vm51 = vcmask 1043456
    %v52 = vsel %vm51, %v42, 0
    %v54 = vsel %vm51, %v43, 0
    %56 = vmatpush.msra.mxu0 0.0
    %57 = vmatpush.msra.mxu0 0.0
    %58 = vmatpush.msra.mxu0 0.0
    %59 = vmatpush.msra.mxu0 0.0
    %60 = vmatpush.msra.mxu0 0.0
    %61 = vmatpush.msra.mxu0 0.0
    %62 = vmatpush.msra.mxu0 0.0
    %63 = vmatpush.msra.mxu0 0.0
    %64 = vmatpush.msra.mxu0 0.0
    %65 = vmatpush.msra.mxu0 0.0
    %66 = vmatpush.msra.mxu0 0.0
    %67 = vmatpush.msra.mxu0 0.0
    %68 = vmatpush.msra.mxu0 0.0
    %69 = vmatpush.msra.mxu0 0.0
    %70 = vmatpush.msra.mxu0 0.0
    %71 = vmatpush.msra.mxu0 %v52
    %72 = vmatmul.f32.gmra.mxu0 %v46
    %v73 = vpop.f32.mrf.mxu0
    %v74 = vadd.f32 %v36, %v73
    %75 = vmatmul.f32.gmra.mxu0 %v49
    %v76 = vpop.f32.mrf.mxu0
    %v77 = vadd.f32 %v36, %v76
    %78 = vdwg.mxu0
    %79 = vmatpush.msra.mxu0 0.0
    %80 = vmatpush.msra.mxu0 0.0
    %81 = vmatpush.msra.mxu0 0.0
    %82 = vmatpush.msra.mxu0 0.0
    %83 = vmatpush.msra.mxu0 0.0
    %84 = vmatpush.msra.mxu0 0.0
    %85 = vmatpush.msra.mxu0 0.0
    %86 = vmatpush.msra.mxu0 0.0
    %87 = vmatpush.msra.mxu0 0.0
    %88 = vmatpush.msra.mxu0 0.0
    %89 = vmatpush.msra.mxu0 0.0
    %90 = vmatpush.msra.mxu0 0.0
    %91 = vmatpush.msra.mxu0 0.0
    %92 = vmatpush.msra.mxu0 0.0
    %93 = vmatpush.msra.mxu0 0.0
    %94 = vmatpush.msra.mxu0 %v54
    %95 = vmatmul.f32.gmra.mxu0 %v46
    %v96 = vpop.f32.mrf.mxu0
    %v97 = vadd.f32 %v37, %v96
    %98 = vmatmul.f32.gmra.mxu0 %v49
    %v99 = vpop.f32.mrf.mxu0
    %v100 = vadd.f32 %v37, %v99
    %101 = vdwg.mxu0
    %v102 = vld [vmem:[%s2] sm:$0xff]
    %104 = vst [vmem:[#allocation1] ss:$2 sm:$0xff] %v102
    %v105 = vld.sshfl [vmem:[#allocation1] sm:$0xff pattern:$0x75316420]
    %v106 = vld.sshfl [vmem:[#allocation1 + $0x8] sm:$0xff pattern:$0x75316420]
    %v107 = vsel %vm51, %v105, 0
    %v109 = vsel %vm51, %v106, 0
    %111 = vmatpush.msra.mxu0 0.0
    %112 = vmatpush.msra.mxu0 0.0
    %113 = vmatpush.msra.mxu0 0.0
    %114 = vmatpush.msra.mxu0 0.0
    %115 = vmatpush.msra.mxu0 0.0
    %116 = vmatpush.msra.mxu0 0.0
    %117 = vmatpush.msra.mxu0 0.0
    %118 = vmatpush.msra.mxu0 0.0
    %119 = vmatpush.msra.mxu0 0.0
    %120 = vmatpush.msra.mxu0 0.0
    %121 = vmatpush.msra.mxu0 0.0
    %122 = vmatpush.msra.mxu0 0.0
    %123 = vmatpush.msra.mxu0 0.0
    %124 = vmatpush.msra.mxu0 0.0
    %125 = vmatpush.msra.mxu0 0.0
    %126 = vmatpush.msra.mxu0 %v107
    %127 = vmatmul.f32.gmra.mxu0 %v46
    %v128 = vpop.f32.mrf.mxu0
    %v129 = vadd.f32 0.0, %v128
    %130 = vmatmul.f32.gmra.mxu0 %v49
    %v131 = vpop.f32.mrf.mxu0
    %v132 = vadd.f32 0.0, %v131
    %133 = vdwg.mxu0
    %134 = vmatpush.msra.mxu0 0.0
    %135 = vmatpush.msra.mxu0 0.0
    %136 = vmatpush.msra.mxu0 0.0
    %137 = vmatpush.msra.mxu0 0.0
    %138 = vmatpush.msra.mxu0 0.0
    %139 = vmatpush.msra.mxu0 0.0
    %140 = vmatpush.msra.mxu0 0.0
    %141 = vmatpush.msra.mxu0 0.0
    %142 = vmatpush.msra.mxu0 0.0
    %143 = vmatpush.msra.mxu0 0.0
    %144 = vmatpush.msra.mxu0 0.0
    %145 = vmatpush.msra.mxu0 0.0
    %146 = vmatpush.msra.mxu0 0.0
    %147 = vmatpush.msra.mxu0 0.0
    %148 = vmatpush.msra.mxu0 0.0
    %149 = vmatpush.msra.mxu0 %v109
    %150 = vmatmul.f32.gmra.mxu0 %v46
    %v151 = vpop.f32.mrf.mxu0
    %v152 = vadd.f32 0.0, %v151
    %153 = vmatmul.f32.gmra.mxu0 %v49
    %v154 = vpop.f32.mrf.mxu0
    %v155 = vadd.f32 0.0, %v154
    %156 = vdwg.mxu0
    %v157 = vld [vmem:[%s4] sm:$0xff]
    %v158 = vld [vmem:[%s4 + $0x8] sm:$0xff]
    %v159 = vld [vmem:[%s4 + $0x10] sm:$0xff]
    %v160 = vld [vmem:[%s4 + $0x18] sm:$0xff]
    %v161 = vld [vmem:[%s4 + $0x20] sm:$0xff]
    %v162 = vld [vmem:[%s4 + $0x28] sm:$0xff]
    %v163 = vld [vmem:[%s4 + $0x30] sm:$0xff]
    %v164 = vld [vmem:[%s4 + $0x38] sm:$0xff]
    %v165 = vld [vmem:[%s4 + $0x40] sm:$0xff]
    %v166 = vld [vmem:[%s4 + $0x48] sm:$0xff]
    %v167 = vld [vmem:[%s4 + $0x50] sm:$0xff]
    %v168 = vld [vmem:[%s4 + $0x58] sm:$0xff]
    %v169 = vld [vmem:[%s4 + $0x60] sm:$0xff]
    %v170 = vld [vmem:[%s4 + $0x68] sm:$0xff]
    %v171 = vld [vmem:[%s4 + $0x70] sm:$0xff]
    %v172 = vld [vmem:[%s4 + $0x78] sm:$0xff]
    %v175 = vrot.slane %v132, 6
    %v176 = vrot.slane %v155, 6
    %v179 = vadd.f32 %v74, %v175
    %v180 = vadd.f32 %v97, %v176
    %vm181 = vcmask 523264
    %v183 = vsel %vm181, 0.0, 0
    %185 = vmatpush.msra.mxu0 0.0
    %186 = vmatpush.msra.mxu0 0.0
    %187 = vmatpush.msra.mxu0 0.0
    %188 = vmatpush.msra.mxu0 0.0
    %189 = vmatpush.msra.mxu0 0.0
    %190 = vmatpush.msra.mxu0 0.0
    %191 = vmatpush.msra.mxu0 0.0
    %192 = vmatpush.msra.mxu0 0.0
    %193 = vmatpush.msra.mxu0 %v171
    %194 = vmatpush.msra.mxu0 %v169
    %195 = vmatpush.msra.mxu0 %v167
    %196 = vmatpush.msra.mxu0 %v165
    %197 = vmatpush.msra.mxu0 %v163
    %198 = vmatpush.msra.mxu0 %v161
    %199 = vmatpush.msra.mxu0 %v159
    %200 = vmatpush.msra.mxu0 %v157
    %201 = vmatmul.f32.gmra.mxu0 %v183
    %v202 = vpop.f32.mrf.mxu0
    %v203 = vadd.f32 0.0, %v202
    %204 = vdwg.mxu0
    %205 = vmatpush.msra.mxu0 0.0
    %206 = vmatpush.msra.mxu0 0.0
    %207 = vmatpush.msra.mxu0 0.0
    %208 = vmatpush.msra.mxu0 0.0
    %209 = vmatpush.msra.mxu0 0.0
    %210 = vmatpush.msra.mxu0 0.0
    %211 = vmatpush.msra.mxu0 0.0
    %212 = vmatpush.msra.mxu0 0.0
    %213 = vmatpush.msra.mxu0 %v172
    %214 = vmatpush.msra.mxu0 %v170
    %215 = vmatpush.msra.mxu0 %v168
    %216 = vmatpush.msra.mxu0 %v166
    %217 = vmatpush.msra.mxu0 %v164
    %218 = vmatpush.msra.mxu0 %v162
    %219 = vmatpush.msra.mxu0 %v160
    %220 = vmatpush.msra.mxu0 %v158
    %221 = vmatmul.f32.gmra.mxu0 %v183
    %v222 = vpop.f32.mrf.mxu0
    %v223 = vadd.f32 0.0, %v222
    %224 = vdwg.mxu0
    %v225 = vadd.f32 %v179, %v203
    %v226 = vadd.f32 %v180, %v223
    %v227 = vxor.u32 %v225, 2147483648
    %v228 = vmul.f32 %v227, 1.442695
    %v229 = vpow.pop %v228
    %v230 = vadd.f32 %v229, 1.0
    %v231 = vrcp.pop %v230
    %v232 = vmul.f32 %v230, %v231
    %v233 = vsub.f32 1.0, %v232
    %v234 = vmul.f32 %v231, %v233
    %v235 = vadd.f32 %v231, %v234
    %vm236 = vweird.f32 %v230
    %vm237 = vweird.f32 %v231
    %vm238 = vmor %vm236, %vm237
    %v239 = vsel %vm238, %v231, %v235
    %v240 = vand.u32 2147483647, %v230
    %vm241 = vcmp.eq.f32.partialorder %v240, 8.507059e+37
    %v242 = vand.u32 %v230, 2147483648
    %v243 = vor.u32 1.1754944e-38, %v242
    %v244 = vsel %vm241, %v243, %v239
    %v245 = vmul.f32 1.0, %v244
    %v246 = vtanh.pop %v226
    %v247 = vxor.u32 %v226, 2147483648
    %v248 = vmul.f32 %v247, 1.442695
    %v249 = vpow.pop %v248
    %v250 = vadd.f32 %v249, 1.0
    %v251 = vrcp.pop %v250
    %v252 = vmul.f32 %v250, %v251
    %v253 = vsub.f32 1.0, %v252
    %v254 = vmul.f32 %v251, %v253
    %v255 = vadd.f32 %v251, %v254
    %vm256 = vweird.f32 %v250
    %vm257 = vweird.f32 %v251
    %vm258 = vmor %vm256, %vm257
    %v259 = vsel %vm258, %v251, %v255
    %v260 = vand.u32 2147483647, %v250
    %vm261 = vcmp.eq.f32.partialorder %v260, 8.507059e+37
    %v262 = vand.u32 %v250, 2147483648
    %v263 = vor.u32 1.1754944e-38, %v262
    %v264 = vsel %vm261, %v263, %v259
    %v265 = vmul.f32 1.0, %v264
    %v266 = vmul.f32 %v245, 0.0
    %v267 = vmul.f32 %v245, %v246
    %269 = vrot.lane.b32.xlu0 %v267, 64
    %v270 = vpop.permute.xlu0 %269
    %v272 = vadd.f32 %v266, %v270
    %v273 = vtanh.pop %v272
    %v274 = vmul.f32 %v265, %v273
    %276 = vrot.lane.b32.xlu0 %v274, 64
    %v277 = vpop.permute.xlu0 %276
    %vm279 = vcmask 254976
    %280 = vst.msk [vmem:[#allocation2] sm:$0x3] %vm279, %v277
    %s281 = scalar_lea.vmem [#allocation2], 14
    %vm282 = vcmask 517376
    %283 = vst.msk [vmem:[%s281] sm:$0x3] %vm282, %v277
    %v284 = vrot.slane %v132, 2
    %v285 = vrot.slane %v155, 2
    %v288 = vadd.f32 %v74, %v284
    %v289 = vadd.f32 %v97, %v285
    %v290 = vsel %vm181, %v277, 0
    %292 = vmatpush.msra.mxu0 0.0
    %293 = vmatpush.msra.mxu0 0.0
    %294 = vmatpush.msra.mxu0 0.0
    %295 = vmatpush.msra.mxu0 0.0
    %296 = vmatpush.msra.mxu0 0.0
    %297 = vmatpush.msra.mxu0 0.0
    %298 = vmatpush.msra.mxu0 0.0
    %299 = vmatpush.msra.mxu0 0.0
    %300 = vmatpush.msra.mxu0 %v171
    %301 = vmatpush.msra.mxu0 %v169
    %302 = vmatpush.msra.mxu0 %v167
    %303 = vmatpush.msra.mxu0 %v165
    %304 = vmatpush.msra.mxu0 %v163
    %305 = vmatpush.msra.mxu0 %v161
    %306 = vmatpush.msra.mxu0 %v159
    %307 = vmatpush.msra.mxu0 %v157
    %308 = vmatmul.f32.gmra.mxu0 %v290
    %v309 = vpop.f32.mrf.mxu0
    %v310 = vadd.f32 0.0, %v309
    %311 = vdwg.mxu0
    %312 = vmatpush.msra.mxu0 0.0
    %313 = vmatpush.msra.mxu0 0.0
    %314 = vmatpush.msra.mxu0 0.0
    %315 = vmatpush.msra.mxu0 0.0
    %316 = vmatpush.msra.mxu0 0.0
    %317 = vmatpush.msra.mxu0 0.0
    %318 = vmatpush.msra.mxu0 0.0
    %319 = vmatpush.msra.mxu0 0.0
    %320 = vmatpush.msra.mxu0 %v172
    %321 = vmatpush.msra.mxu0 %v170
    %322 = vmatpush.msra.mxu0 %v168
    %323 = vmatpush.msra.mxu0 %v166
    %324 = vmatpush.msra.mxu0 %v164
    %325 = vmatpush.msra.mxu0 %v162
    %326 = vmatpush.msra.mxu0 %v160
    %327 = vmatpush.msra.mxu0 %v158
    %328 = vmatmul.f32.gmra.mxu0 %v290
    %v329 = vpop.f32.mrf.mxu0
    %v330 = vadd.f32 0.0, %v329
    %331 = vdwg.mxu0
    %v334 = vrot.slane %v310, 6
    %v335 = vrot.slane %v330, 6
    %v338 = vadd.f32 %v288, %v334
    %v339 = vadd.f32 %v289, %v335
    %v340 = vxor.u32 %v338, 2147483648
    %v341 = vmul.f32 %v340, 1.442695
    %v342 = vpow.pop %v341
    %v343 = vadd.f32 %v342, 1.0
    %v344 = vrcp.pop %v343
    %v345 = vmul.f32 %v343, %v344
    %v346 = vsub.f32 1.0, %v345
    %v347 = vmul.f32 %v344, %v346
    %v348 = vadd.f32 %v344, %v347
    %vm349 = vweird.f32 %v343
    %vm350 = vweird.f32 %v344
    %vm351 = vmor %vm349, %vm350
    %v352 = vsel %vm351, %v344, %v348
    %v353 = vand.u32 2147483647, %v343
    %vm354 = vcmp.eq.f32.partialorder %v353, 8.507059e+37
    %v355 = vand.u32 %v343, 2147483648
    %v356 = vor.u32 1.1754944e-38, %v355
    %v357 = vsel %vm354, %v356, %v352
    %v358 = vmul.f32 1.0, %v357
    %v359 = vtanh.pop %v339
    %v360 = vxor.u32 %v339, 2147483648
    %v361 = vmul.f32 %v360, 1.442695
    %v362 = vpow.pop %v361
    %v363 = vadd.f32 %v362, 1.0
    %v364 = vrcp.pop %v363
    %v365 = vmul.f32 %v363, %v364
    %v366 = vsub.f32 1.0, %v365
    %v367 = vmul.f32 %v364, %v366
    %v368 = vadd.f32 %v364, %v367
    %vm369 = vweird.f32 %v363
    %vm370 = vweird.f32 %v364
    %vm371 = vmor %vm369, %vm370
    %v372 = vsel %vm371, %v364, %v368
    %v373 = vand.u32 2147483647, %v363
    %vm374 = vcmp.eq.f32.partialorder %v373, 8.507059e+37
    %v375 = vand.u32 %v363, 2147483648
    %v376 = vor.u32 1.1754944e-38, %v375
    %v377 = vsel %vm374, %v376, %v372
    %v378 = vmul.f32 1.0, %v377
    %v380 = vrot.slane %v272, 6
    %v382 = vmul.f32 %v358, %v380
    %v383 = vmul.f32 %v358, %v359
    %385 = vrot.lane.b32.xlu0 %v383, 64
    %v386 = vpop.permute.xlu0 %385
    %v388 = vadd.f32 %v382, %v386
    %v389 = vtanh.pop %v388
    %v390 = vmul.f32 %v378, %v389
    %392 = vrot.lane.b32.xlu0 %v390, 64
    %v393 = vpop.permute.xlu0 %392
    %s395 = scalar_lea.vmem [#allocation2], 2
    %vm396 = vcmask 257026
    %397 = vst.msk [vmem:[%s395 - $0x2] sm:$0xc] %vm396, %v393
    %s398 = scalar_lea.vmem [#allocation2], 12
    %vm399 = vcmask 519426
    %400 = vst.msk [vmem:[%s398 - $0x2] sm:$0xc] %vm399, %v393
    %v401 = vrot.slane %v390, 2
    %402 = vrot.lane.b32.xlu0 %v401, 64
    %v403 = vpop.permute.xlu0 %402
    %v404 = vsel %vm181, %v403, 0
    %406 = vmatpush.msra.mxu0 0.0
    %407 = vmatpush.msra.mxu0 0.0
    %408 = vmatpush.msra.mxu0 0.0
    %409 = vmatpush.msra.mxu0 0.0
    %410 = vmatpush.msra.mxu0 0.0
    %411 = vmatpush.msra.mxu0 0.0
    %412 = vmatpush.msra.mxu0 0.0
    %413 = vmatpush.msra.mxu0 0.0
    %414 = vmatpush.msra.mxu0 %v171
    %415 = vmatpush.msra.mxu0 %v169
    %416 = vmatpush.msra.mxu0 %v167
    %417 = vmatpush.msra.mxu0 %v165
    %418 = vmatpush.msra.mxu0 %v163
    %419 = vmatpush.msra.mxu0 %v161
    %420 = vmatpush.msra.mxu0 %v159
    %421 = vmatpush.msra.mxu0 %v157
    %422 = vmatmul.f32.gmra.mxu0 %v404
    %v423 = vpop.f32.mrf.mxu0
    %v424 = vadd.f32 0.0, %v423
    %425 = vdwg.mxu0
    %426 = vmatpush.msra.mxu0 0.0
    %427 = vmatpush.msra.mxu0 0.0
    %428 = vmatpush.msra.mxu0 0.0
    %429 = vmatpush.msra.mxu0 0.0
    %430 = vmatpush.msra.mxu0 0.0
    %431 = vmatpush.msra.mxu0 0.0
    %432 = vmatpush.msra.mxu0 0.0
    %433 = vmatpush.msra.mxu0 0.0
    %434 = vmatpush.msra.mxu0 %v172
    %435 = vmatpush.msra.mxu0 %v170
    %436 = vmatpush.msra.mxu0 %v168
    %437 = vmatpush.msra.mxu0 %v166
    %438 = vmatpush.msra.mxu0 %v164
    %439 = vmatpush.msra.mxu0 %v162
    %440 = vmatpush.msra.mxu0 %v160
    %441 = vmatpush.msra.mxu0 %v158
    %442 = vmatmul.f32.gmra.mxu0 %v404
    %v443 = vpop.f32.mrf.mxu0
    %v444 = vadd.f32 0.0, %v443
    %445 = vdwg.mxu0
    %v448 = vrot.slane %v424, 4
    %v449 = vrot.slane %v444, 4
    %v452 = vadd.f32 %v179, %v448
    %v453 = vadd.f32 %v180, %v449
    %v454 = vxor.u32 %v452, 2147483648
    %v455 = vmul.f32 %v454, 1.442695
    %v456 = vpow.pop %v455
    %v457 = vadd.f32 %v456, 1.0
    %v458 = vrcp.pop %v457
    %v459 = vmul.f32 %v457, %v458
    %v460 = vsub.f32 1.0, %v459
    %v461 = vmul.f32 %v458, %v460
    %v462 = vadd.f32 %v458, %v461
    %vm463 = vweird.f32 %v457
    %vm464 = vweird.f32 %v458
    %vm465 = vmor %vm463, %vm464
    %v466 = vsel %vm465, %v458, %v462
    %v467 = vand.u32 2147483647, %v457
    %vm468 = vcmp.eq.f32.partialorder %v467, 8.507059e+37
    %v469 = vand.u32 %v457, 2147483648
    %v470 = vor.u32 1.1754944e-38, %v469
    %v471 = vsel %vm468, %v470, %v466
    %v472 = vmul.f32 1.0, %v471
    %v473 = vtanh.pop %v453
    %v474 = vxor.u32 %v453, 2147483648
    %v475 = vmul.f32 %v474, 1.442695
    %v476 = vpow.pop %v475
    %v477 = vadd.f32 %v476, 1.0
    %v478 = vrcp.pop %v477
    %v479 = vmul.f32 %v477, %v478
    %v480 = vsub.f32 1.0, %v479
    %v481 = vmul.f32 %v478, %v480
    %v482 = vadd.f32 %v478, %v481
    %vm483 = vweird.f32 %v477
    %vm484 = vweird.f32 %v478
    %vm485 = vmor %vm483, %vm484
    %v486 = vsel %vm485, %v478, %v482
    %v487 = vand.u32 2147483647, %v477
    %vm488 = vcmp.eq.f32.partialorder %v487, 8.507059e+37
    %v489 = vand.u32 %v477, 2147483648
    %v490 = vor.u32 1.1754944e-38, %v489
    %v491 = vsel %vm488, %v490, %v486
    %v492 = vmul.f32 1.0, %v491
    %v494 = vrot.slane %v388, 6
    %v496 = vmul.f32 %v472, %v494
    %v497 = vmul.f32 %v472, %v473
    %499 = vrot.lane.b32.xlu0 %v497, 64
    %v500 = vpop.permute.xlu0 %499
    %v502 = vadd.f32 %v496, %v500
    %v503 = vtanh.pop %v502
    %v504 = vmul.f32 %v492, %v503
    %506 = vrot.lane.b32.xlu0 %v504, 64
    %v507 = vpop.permute.xlu0 %506
    %s509 = scalar_lea.vmem [#allocation2], 4
    %vm510 = vcmask 259076
    %511 = vst.msk [vmem:[%s509 - $0x4] sm:$0x30] %vm510, %v507
    %s512 = scalar_lea.vmem [#allocation2], 10
    %vm513 = vcmask 521476
    %514 = vst.msk [vmem:[%s512 - $0x4] sm:$0x30] %vm513, %v507
    %v515 = vrot.slane %v504, 4
    %516 = vrot.lane.b32.xlu0 %v515, 64
    %v517 = vpop.permute.xlu0 %516
    %v518 = vsel %vm181, %v517, 0
    %520 = vmatpush.msra.mxu0 0.0
    %521 = vmatpush.msra.mxu0 0.0
    %522 = vmatpush.msra.mxu0 0.0
    %523 = vmatpush.msra.mxu0 0.0
    %524 = vmatpush.msra.mxu0 0.0
    %525 = vmatpush.msra.mxu0 0.0
    %526 = vmatpush.msra.mxu0 0.0
    %527 = vmatpush.msra.mxu0 0.0
    %528 = vmatpush.msra.mxu0 %v171
    %529 = vmatpush.msra.mxu0 %v169
    %530 = vmatpush.msra.mxu0 %v167
    %531 = vmatpush.msra.mxu0 %v165
    %532 = vmatpush.msra.mxu0 %v163
    %533 = vmatpush.msra.mxu0 %v161
    %534 = vmatpush.msra.mxu0 %v159
    %535 = vmatpush.msra.mxu0 %v157
    %536 = vmatmul.f32.gmra.mxu0 %v518
    %v537 = vpop.f32.mrf.mxu0
    %v538 = vadd.f32 0.0, %v537
    %539 = vdwg.mxu0
    %540 = vmatpush.msra.mxu0 0.0
    %541 = vmatpush.msra.mxu0 0.0
    %542 = vmatpush.msra.mxu0 0.0
    %543 = vmatpush.msra.mxu0 0.0
    %544 = vmatpush.msra.mxu0 0.0
    %545 = vmatpush.msra.mxu0 0.0
    %546 = vmatpush.msra.mxu0 0.0
    %547 = vmatpush.msra.mxu0 0.0
    %548 = vmatpush.msra.mxu0 %v172
    %549 = vmatpush.msra.mxu0 %v170
    %550 = vmatpush.msra.mxu0 %v168
    %551 = vmatpush.msra.mxu0 %v166
    %552 = vmatpush.msra.mxu0 %v164
    %553 = vmatpush.msra.mxu0 %v162
    %554 = vmatpush.msra.mxu0 %v160
    %555 = vmatpush.msra.mxu0 %v158
    %556 = vmatmul.f32.gmra.mxu0 %v518
    %v557 = vpop.f32.mrf.mxu0
    %v558 = vadd.f32 0.0, %v557
    %559 = vdwg.mxu0
    %v562 = vrot.slane %v538, 2
    %v563 = vrot.slane %v558, 2
    %v566 = vadd.f32 %v288, %v562
    %v567 = vadd.f32 %v289, %v563
    %v568 = vxor.u32 %v566, 2147483648
    %v569 = vmul.f32 %v568, 1.442695
    %v570 = vpow.pop %v569
    %v571 = vadd.f32 %v570, 1.0
    %v572 = vrcp.pop %v571
    %v573 = vmul.f32 %v571, %v572
    %v574 = vsub.f32 1.0, %v573
    %v575 = vmul.f32 %v572, %v574
    %v576 = vadd.f32 %v572, %v575
    %vm577 = vweird.f32 %v571
    %vm578 = vweird.f32 %v572
    %vm579 = vmor %vm577, %vm578
    %v580 = vsel %vm579, %v572, %v576
    %v581 = vand.u32 2147483647, %v571
    %vm582 = vcmp.eq.f32.partialorder %v581, 8.507059e+37
    %v583 = vand.u32 %v571, 2147483648
    %v584 = vor.u32 1.1754944e-38, %v583
    %v585 = vsel %vm582, %v584, %v580
    %v586 = vmul.f32 1.0, %v585
    %v587 = vtanh.pop %v567
    %v588 = vxor.u32 %v567, 2147483648
    %v589 = vmul.f32 %v588, 1.442695
    %v590 = vpow.pop %v589
    %v591 = vadd.f32 %v590, 1.0
    %v592 = vrcp.pop %v591
    %v593 = vmul.f32 %v591, %v592
    %v594 = vsub.f32 1.0, %v593
    %v595 = vmul.f32 %v592, %v594
    %v596 = vadd.f32 %v592, %v595
    %vm597 = vweird.f32 %v591
    %vm598 = vweird.f32 %v592
    %vm599 = vmor %vm597, %vm598
    %v600 = vsel %vm599, %v592, %v596
    %v601 = vand.u32 2147483647, %v591
    %vm602 = vcmp.eq.f32.partialorder %v601, 8.507059e+37
    %v603 = vand.u32 %v591, 2147483648
    %v604 = vor.u32 1.1754944e-38, %v603
    %v605 = vsel %vm602, %v604, %v600
    %v606 = vmul.f32 1.0, %v605
    %v608 = vrot.slane %v502, 6
    %v610 = vmul.f32 %v586, %v608
    %v611 = vmul.f32 %v586, %v587
    %613 = vrot.lane.b32.xlu0 %v611, 64
    %v614 = vpop.permute.xlu0 %613
    %v616 = vadd.f32 %v610, %v614
    %v617 = vtanh.pop %v616
    %v618 = vmul.f32 %v606, %v617
    %620 = vrot.lane.b32.xlu0 %v618, 64
    %v621 = vpop.permute.xlu0 %620
    %s623 = scalar_lea.vmem [#allocation2], 6
    %vm624 = vcmask 261126
    %625 = vst.msk [vmem:[%s623 - $0x6] sm:$0xc0] %vm624, %v621
    %s626 = scalar_lea.vmem [#allocation2], 8
    %vm627 = vcmask 523526
    %628 = vst.msk [vmem:[%s626 - $0x6] sm:$0xc0] %vm627, %v621
    %v631 = vrot.slane %v129, 6
    %v632 = vrot.slane %v152, 6
    %v635 = vadd.f32 %v77, %v631
    %v636 = vadd.f32 %v100, %v632
    %v637 = vrot.slane %v618, 6
    %638 = vrot.lane.b32.xlu0 %v637, 64
    %v639 = vpop.permute.xlu0 %638
    %v640 = vsel %vm181, %v639, 0
    %642 = vmatpush.msra.mxu0 0.0
    %643 = vmatpush.msra.mxu0 0.0
    %644 = vmatpush.msra.mxu0 0.0
    %645 = vmatpush.msra.mxu0 0.0
    %646 = vmatpush.msra.mxu0 0.0
    %647 = vmatpush.msra.mxu0 0.0
    %648 = vmatpush.msra.mxu0 0.0
    %649 = vmatpush.msra.mxu0 0.0
    %650 = vmatpush.msra.mxu0 %v171
    %651 = vmatpush.msra.mxu0 %v169
    %652 = vmatpush.msra.mxu0 %v167
    %653 = vmatpush.msra.mxu0 %v165
    %654 = vmatpush.msra.mxu0 %v163
    %655 = vmatpush.msra.mxu0 %v161
    %656 = vmatpush.msra.mxu0 %v159
    %657 = vmatpush.msra.mxu0 %v157
    %658 = vmatmul.f32.gmra.mxu0 %v640
    %v659 = vpop.f32.mrf.mxu0
    %v660 = vadd.f32 0.0, %v659
    %661 = vdwg.mxu0
    %662 = vmatpush.msra.mxu0 0.0
    %663 = vmatpush.msra.mxu0 0.0
    %664 = vmatpush.msra.mxu0 0.0
    %665 = vmatpush.msra.mxu0 0.0
    %666 = vmatpush.msra.mxu0 0.0
    %667 = vmatpush.msra.mxu0 0.0
    %668 = vmatpush.msra.mxu0 0.0
    %669 = vmatpush.msra.mxu0 0.0
    %670 = vmatpush.msra.mxu0 %v172
    %671 = vmatpush.msra.mxu0 %v170
    %672 = vmatpush.msra.mxu0 %v168
    %673 = vmatpush.msra.mxu0 %v166
    %674 = vmatpush.msra.mxu0 %v164
    %675 = vmatpush.msra.mxu0 %v162
    %676 = vmatpush.msra.mxu0 %v160
    %677 = vmatpush.msra.mxu0 %v158
    %678 = vmatmul.f32.gmra.mxu0 %v640
    %v679 = vpop.f32.mrf.mxu0
    %v680 = vadd.f32 0.0, %v679
    %681 = vdwg.mxu0
    %v682 = vadd.f32 %v635, %v660
    %v683 = vadd.f32 %v636, %v680
    %v684 = vxor.u32 %v682, 2147483648
    %v685 = vmul.f32 %v684, 1.442695
    %v686 = vpow.pop %v685
    %v687 = vadd.f32 %v686, 1.0
    %v688 = vrcp.pop %v687
    %v689 = vmul.f32 %v687, %v688
    %v690 = vsub.f32 1.0, %v689
    %v691 = vmul.f32 %v688, %v690
    %v692 = vadd.f32 %v688, %v691
    %vm693 = vweird.f32 %v687
    %vm694 = vweird.f32 %v688
    %vm695 = vmor %vm693, %vm694
    %v696 = vsel %vm695, %v688, %v692
    %v697 = vand.u32 2147483647, %v687
    %vm698 = vcmp.eq.f32.partialorder %v697, 8.507059e+37
    %v699 = vand.u32 %v687, 2147483648
    %v700 = vor.u32 1.1754944e-38, %v699
    %v701 = vsel %vm698, %v700, %v696
    %v702 = vmul.f32 1.0, %v701
    %v703 = vtanh.pop %v683
    %v704 = vxor.u32 %v683, 2147483648
    %v705 = vmul.f32 %v704, 1.442695
    %v706 = vpow.pop %v705
    %v707 = vadd.f32 %v706, 1.0
    %v708 = vrcp.pop %v707
    %v709 = vmul.f32 %v707, %v708
    %v710 = vsub.f32 1.0, %v709
    %v711 = vmul.f32 %v708, %v710
    %v712 = vadd.f32 %v708, %v711
    %vm713 = vweird.f32 %v707
    %vm714 = vweird.f32 %v708
    %vm715 = vmor %vm713, %vm714
    %v716 = vsel %vm715, %v708, %v712
    %v717 = vand.u32 2147483647, %v707
    %vm718 = vcmp.eq.f32.partialorder %v717, 8.507059e+37
    %v719 = vand.u32 %v707, 2147483648
    %v720 = vor.u32 1.1754944e-38, %v719
    %v721 = vsel %vm718, %v720, %v716
    %v722 = vmul.f32 1.0, %v721
    %v724 = vrot.slane %v616, 6
    %v726 = vmul.f32 %v702, %v724
    %v727 = vmul.f32 %v702, %v703
    %729 = vrot.lane.b32.xlu0 %v727, 64
    %v730 = vpop.permute.xlu0 %729
    %v732 = vadd.f32 %v726, %v730
    %v733 = vtanh.pop %v732
    %v734 = vmul.f32 %v722, %v733
    %736 = vrot.lane.b32.xlu0 %v734, 64
    %v737 = vpop.permute.xlu0 %736
    %739 = vst.msk [vmem:[%s626] sm:$0x3] %vm279, %v737
    %740 = vst.msk [vmem:[%s623] sm:$0x3] %vm282, %v737
    %v741 = vrot.slane %v129, 2
    %v742 = vrot.slane %v152, 2
    %v745 = vadd.f32 %v77, %v741
    %v746 = vadd.f32 %v100, %v742
    %v747 = vsel %vm181, %v737, 0
    %749 = vmatpush.msra.mxu0 0.0
    %750 = vmatpush.msra.mxu0 0.0
    %751 = vmatpush.msra.mxu0 0.0
    %752 = vmatpush.msra.mxu0 0.0
    %753 = vmatpush.msra.mxu0 0.0
    %754 = vmatpush.msra.mxu0 0.0
    %755 = vmatpush.msra.mxu0 0.0
    %756 = vmatpush.msra.mxu0 0.0
    %757 = vmatpush.msra.mxu0 %v171
    %758 = vmatpush.msra.mxu0 %v169
    %759 = vmatpush.msra.mxu0 %v167
    %760 = vmatpush.msra.mxu0 %v165
    %761 = vmatpush.msra.mxu0 %v163
    %762 = vmatpush.msra.mxu0 %v161
    %763 = vmatpush.msra.mxu0 %v159
    %764 = vmatpush.msra.mxu0 %v157
    %765 = vmatmul.f32.gmra.mxu0 %v747
    %v766 = vpop.f32.mrf.mxu0
    %v767 = vadd.f32 0.0, %v766
    %768 = vdwg.mxu0
    %769 = vmatpush.msra.mxu0 0.0
    %770 = vmatpush.msra.mxu0 0.0
    %771 = vmatpush.msra.mxu0 0.0
    %772 = vmatpush.msra.mxu0 0.0
    %773 = vmatpush.msra.mxu0 0.0
    %774 = vmatpush.msra.mxu0 0.0
    %775 = vmatpush.msra.mxu0 0.0
    %776 = vmatpush.msra.mxu0 0.0
    %777 = vmatpush.msra.mxu0 %v172
    %778 = vmatpush.msra.mxu0 %v170
    %779 = vmatpush.msra.mxu0 %v168
    %780 = vmatpush.msra.mxu0 %v166
    %781 = vmatpush.msra.mxu0 %v164
    %782 = vmatpush.msra.mxu0 %v162
    %783 = vmatpush.msra.mxu0 %v160
    %784 = vmatpush.msra.mxu0 %v158
    %785 = vmatmul.f32.gmra.mxu0 %v747
    %v786 = vpop.f32.mrf.mxu0
    %v787 = vadd.f32 0.0, %v786
    %788 = vdwg.mxu0
    %v791 = vrot.slane %v767, 6
    %v792 = vrot.slane %v787, 6
    %v795 = vadd.f32 %v745, %v791
    %v796 = vadd.f32 %v746, %v792
    %v797 = vxor.u32 %v795, 2147483648
    %v798 = vmul.f32 %v797, 1.442695
    %v799 = vpow.pop %v798
    %v800 = vadd.f32 %v799, 1.0
    %v801 = vrcp.pop %v800
    %v802 = vmul.f32 %v800, %v801
    %v803 = vsub.f32 1.0, %v802
    %v804 = vmul.f32 %v801, %v803
    %v805 = vadd.f32 %v801, %v804
    %vm806 = vweird.f32 %v800
    %vm807 = vweird.f32 %v801
    %vm808 = vmor %vm806, %vm807
    %v809 = vsel %vm808, %v801, %v805
    %v810 = vand.u32 2147483647, %v800
    %vm811 = vcmp.eq.f32.partialorder %v810, 8.507059e+37
    %v812 = vand.u32 %v800, 2147483648
    %v813 = vor.u32 1.1754944e-38, %v812
    %v814 = vsel %vm811, %v813, %v809
    %v815 = vmul.f32 1.0, %v814
    %v816 = vtanh.pop %v796
    %v817 = vxor.u32 %v796, 2147483648
    %v818 = vmul.f32 %v817, 1.442695
    %v819 = vpow.pop %v818
    %v820 = vadd.f32 %v819, 1.0
    %v821 = vrcp.pop %v820
    %v822 = vmul.f32 %v820, %v821
    %v823 = vsub.f32 1.0, %v822
    %v824 = vmul.f32 %v821, %v823
    %v825 = vadd.f32 %v821, %v824
    %vm826 = vweird.f32 %v820
    %vm827 = vweird.f32 %v821
    %vm828 = vmor %vm826, %vm827
    %v829 = vsel %vm828, %v821, %v825
    %v830 = vand.u32 2147483647, %v820
    %vm831 = vcmp.eq.f32.partialorder %v830, 8.507059e+37
    %v832 = vand.u32 %v820, 2147483648
    %v833 = vor.u32 1.1754944e-38, %v832
    %v834 = vsel %vm831, %v833, %v829
    %v835 = vmul.f32 1.0, %v834
    %v837 = vrot.slane %v732, 6
    %v839 = vmul.f32 %v815, %v837
    %v840 = vmul.f32 %v815, %v816
    %842 = vrot.lane.b32.xlu0 %v840, 64
    %v843 = vpop.permute.xlu0 %842
    %v845 = vadd.f32 %v839, %v843
    %v846 = vtanh.pop %v845
    %v847 = vmul.f32 %v835, %v846
    %849 = vrot.lane.b32.xlu0 %v847, 64
    %v850 = vpop.permute.xlu0 %849
    %852 = vst.msk [vmem:[%s512 - $0x2] sm:$0xc] %vm396, %v850
    %853 = vst.msk [vmem:[%s509 - $0x2] sm:$0xc] %vm399, %v850
    %v854 = vrot.slane %v847, 2
    %855 = vrot.lane.b32.xlu0 %v854, 64
    %v856 = vpop.permute.xlu0 %855
    %v857 = vsel %vm181, %v856, 0
    %859 = vmatpush.msra.mxu0 0.0
    %860 = vmatpush.msra.mxu0 0.0
    %861 = vmatpush.msra.mxu0 0.0
    %862 = vmatpush.msra.mxu0 0.0
    %863 = vmatpush.msra.mxu0 0.0
    %864 = vmatpush.msra.mxu0 0.0
    %865 = vmatpush.msra.mxu0 0.0
    %866 = vmatpush.msra.mxu0 0.0
    %867 = vmatpush.msra.mxu0 %v171
    %868 = vmatpush.msra.mxu0 %v169
    %869 = vmatpush.msra.mxu0 %v167
    %870 = vmatpush.msra.mxu0 %v165
    %871 = vmatpush.msra.mxu0 %v163
    %872 = vmatpush.msra.mxu0 %v161
    %873 = vmatpush.msra.mxu0 %v159
    %874 = vmatpush.msra.mxu0 %v157
    %875 = vmatmul.f32.gmra.mxu0 %v857
    %v876 = vpop.f32.mrf.mxu0
    %v877 = vadd.f32 0.0, %v876
    %878 = vdwg.mxu0
    %879 = vmatpush.msra.mxu0 0.0
    %880 = vmatpush.msra.mxu0 0.0
    %881 = vmatpush.msra.mxu0 0.0
    %882 = vmatpush.msra.mxu0 0.0
    %883 = vmatpush.msra.mxu0 0.0
    %884 = vmatpush.msra.mxu0 0.0
    %885 = vmatpush.msra.mxu0 0.0
    %886 = vmatpush.msra.mxu0 0.0
    %887 = vmatpush.msra.mxu0 %v172
    %888 = vmatpush.msra.mxu0 %v170
    %889 = vmatpush.msra.mxu0 %v168
    %890 = vmatpush.msra.mxu0 %v166
    %891 = vmatpush.msra.mxu0 %v164
    %892 = vmatpush.msra.mxu0 %v162
    %893 = vmatpush.msra.mxu0 %v160
    %894 = vmatpush.msra.mxu0 %v158
    %895 = vmatmul.f32.gmra.mxu0 %v857
    %v896 = vpop.f32.mrf.mxu0
    %v897 = vadd.f32 0.0, %v896
    %898 = vdwg.mxu0
    %v901 = vrot.slane %v877, 4
    %v902 = vrot.slane %v897, 4
    %v905 = vadd.f32 %v635, %v901
    %v906 = vadd.f32 %v636, %v902
    %v907 = vxor.u32 %v905, 2147483648
    %v908 = vmul.f32 %v907, 1.442695
    %v909 = vpow.pop %v908
    %v910 = vadd.f32 %v909, 1.0
    %v911 = vrcp.pop %v910
    %v912 = vmul.f32 %v910, %v911
    %v913 = vsub.f32 1.0, %v912
    %v914 = vmul.f32 %v911, %v913
    %v915 = vadd.f32 %v911, %v914
    %vm916 = vweird.f32 %v910
    %vm917 = vweird.f32 %v911
    %vm918 = vmor %vm916, %vm917
    %v919 = vsel %vm918, %v911, %v915
    %v920 = vand.u32 2147483647, %v910
    %vm921 = vcmp.eq.f32.partialorder %v920, 8.507059e+37
    %v922 = vand.u32 %v910, 2147483648
    %v923 = vor.u32 1.1754944e-38, %v922
    %v924 = vsel %vm921, %v923, %v919
    %v925 = vmul.f32 1.0, %v924
    %v926 = vtanh.pop %v906
    %v927 = vxor.u32 %v906, 2147483648
    %v928 = vmul.f32 %v927, 1.442695
    %v929 = vpow.pop %v928
    %v930 = vadd.f32 %v929, 1.0
    %v931 = vrcp.pop %v930
    %v932 = vmul.f32 %v930, %v931
    %v933 = vsub.f32 1.0, %v932
    %v934 = vmul.f32 %v931, %v933
    %v935 = vadd.f32 %v931, %v934
    %vm936 = vweird.f32 %v930
    %vm937 = vweird.f32 %v931
    %vm938 = vmor %vm936, %vm937
    %v939 = vsel %vm938, %v931, %v935
    %v940 = vand.u32 2147483647, %v930
    %vm941 = vcmp.eq.f32.partialorder %v940, 8.507059e+37
    %v942 = vand.u32 %v930, 2147483648
    %v943 = vor.u32 1.1754944e-38, %v942
    %v944 = vsel %vm941, %v943, %v939
    %v945 = vmul.f32 1.0, %v944
    %v947 = vrot.slane %v845, 6
    %v949 = vmul.f32 %v925, %v947
    %v950 = vmul.f32 %v925, %v926
    %952 = vrot.lane.b32.xlu0 %v950, 64
    %v953 = vpop.permute.xlu0 %952
    %v955 = vadd.f32 %v949, %v953
    %v956 = vtanh.pop %v955
    %v957 = vmul.f32 %v945, %v956
    %959 = vrot.lane.b32.xlu0 %v957, 64
    %v960 = vpop.permute.xlu0 %959
    %962 = vst.msk [vmem:[%s398 - $0x4] sm:$0x30] %vm510, %v960
    %963 = vst.msk [vmem:[%s395 - $0x4] sm:$0x30] %vm513, %v960
    %v964 = vrot.slane %v957, 4
    %965 = vrot.lane.b32.xlu0 %v964, 64
    %v966 = vpop.permute.xlu0 %965
    %v967 = vsel %vm181, %v966, 0
    %969 = vmatpush.msra.mxu0 0.0
    %970 = vmatpush.msra.mxu0 0.0
    %971 = vmatpush.msra.mxu0 0.0
    %972 = vmatpush.msra.mxu0 0.0
    %973 = vmatpush.msra.mxu0 0.0
    %974 = vmatpush.msra.mxu0 0.0
    %975 = vmatpush.msra.mxu0 0.0
    %976 = vmatpush.msra.mxu0 0.0
    %977 = vmatpush.msra.mxu0 %v171
    %978 = vmatpush.msra.mxu0 %v169
    %979 = vmatpush.msra.mxu0 %v167
    %980 = vmatpush.msra.mxu0 %v165
    %981 = vmatpush.msra.mxu0 %v163
    %982 = vmatpush.msra.mxu0 %v161
    %983 = vmatpush.msra.mxu0 %v159
    %984 = vmatpush.msra.mxu0 %v157
    %985 = vmatmul.f32.gmra.mxu0 %v967
    %v986 = vpop.f32.mrf.mxu0
    %v987 = vadd.f32 0.0, %v986
    %988 = vdwg.mxu0
    %989 = vmatpush.msra.mxu0 0.0
    %990 = vmatpush.msra.mxu0 0.0
    %991 = vmatpush.msra.mxu0 0.0
    %992 = vmatpush.msra.mxu0 0.0
    %993 = vmatpush.msra.mxu0 0.0
    %994 = vmatpush.msra.mxu0 0.0
    %995 = vmatpush.msra.mxu0 0.0
    %996 = vmatpush.msra.mxu0 0.0
    %997 = vmatpush.msra.mxu0 %v172
    %998 = vmatpush.msra.mxu0 %v170
    %999 = vmatpush.msra.mxu0 %v168
    %1000 = vmatpush.msra.mxu0 %v166
    %1001 = vmatpush.msra.mxu0 %v164
    %1002 = vmatpush.msra.mxu0 %v162
    %1003 = vmatpush.msra.mxu0 %v160
    %1004 = vmatpush.msra.mxu0 %v158
    %1005 = vmatmul.f32.gmra.mxu0 %v967
    %v1006 = vpop.f32.mrf.mxu0
    %v1007 = vadd.f32 0.0, %v1006
    %1008 = vdwg.mxu0
    %v1011 = vrot.slane %v987, 2
    %v1012 = vrot.slane %v1007, 2
    %v1015 = vadd.f32 %v745, %v1011
    %v1016 = vadd.f32 %v746, %v1012
    %v1017 = vxor.u32 %v1015, 2147483648
    %v1018 = vmul.f32 %v1017, 1.442695
    %v1019 = vpow.pop %v1018
    %v1020 = vadd.f32 %v1019, 1.0
    %v1021 = vrcp.pop %v1020
    %v1022 = vmul.f32 %v1020, %v1021
    %v1023 = vsub.f32 1.0, %v1022
    %v1024 = vmul.f32 %v1021, %v1023
    %v1025 = vadd.f32 %v1021, %v1024
    %vm1026 = vweird.f32 %v1020
    %vm1027 = vweird.f32 %v1021
    %vm1028 = vmor %vm1026, %vm1027
    %v1029 = vsel %vm1028, %v1021, %v1025
    %v1030 = vand.u32 2147483647, %v1020
    %vm1031 = vcmp.eq.f32.partialorder %v1030, 8.507059e+37
    %v1032 = vand.u32 %v1020, 2147483648
    %v1033 = vor.u32 1.1754944e-38, %v1032
    %v1034 = vsel %vm1031, %v1033, %v1029
    %v1035 = vmul.f32 1.0, %v1034
    %v1036 = vtanh.pop %v1016
    %v1037 = vxor.u32 %v1016, 2147483648
    %v1038 = vmul.f32 %v1037, 1.442695
    %v1039 = vpow.pop %v1038
    %v1040 = vadd.f32 %v1039, 1.0
    %v1041 = vrcp.pop %v1040
    %v1042 = vmul.f32 %v1040, %v1041
    %v1043 = vsub.f32 1.0, %v1042
    %v1044 = vmul.f32 %v1041, %v1043
    %v1045 = vadd.f32 %v1041, %v1044
    %vm1046 = vweird.f32 %v1040
    %vm1047 = vweird.f32 %v1041
    %vm1048 = vmor %vm1046, %vm1047
    %v1049 = vsel %vm1048, %v1041, %v1045
    %v1050 = vand.u32 2147483647, %v1040
    %vm1051 = vcmp.eq.f32.partialorder %v1050, 8.507059e+37
    %v1052 = vand.u32 %v1040, 2147483648
    %v1053 = vor.u32 1.1754944e-38, %v1052
    %v1054 = vsel %vm1051, %v1053, %v1049
    %v1055 = vmul.f32 1.0, %v1054
    %v1057 = vrot.slane %v955, 6
    %v1059 = vmul.f32 %v1035, %v1057
    %v1060 = vmul.f32 %v1035, %v1036
    %1062 = vrot.lane.b32.xlu0 %v1060, 64
    %v1063 = vpop.permute.xlu0 %1062
    %v1065 = vadd.f32 %v1059, %v1063
    %v1066 = vtanh.pop %v1065
    %v1067 = vmul.f32 %v1055, %v1066
    %1069 = vrot.lane.b32.xlu0 %v1067, 64
    %v1070 = vpop.permute.xlu0 %1069
    %1072 = vst.msk [vmem:[%s281 - $0x6] sm:$0xc0] %vm624, %v1070
    %1073 = vst.msk [vmem:[#allocation2 - $0x6] sm:$0xc0] %vm627, %v1070
    %v1074 = vsel %vm181, %v1070, %v1065
    %v1075 = vld [vmem:[%s5] sm:$0xff]
    %v1076 = vld [vmem:[%s5 + $0x8] sm:$0xff]
    %v1077 = vld [vmem:[%s5 + $0x10] sm:$0xff]
    %v1078 = vld [vmem:[%s5 + $0x18] sm:$0xff]
    %v1079 = vld [vmem:[%s5 + $0x20] sm:$0xff]
    %v1080 = vld [vmem:[%s5 + $0x28] sm:$0xff]
    %v1081 = vld [vmem:[%s5 + $0x30] sm:$0xff]
    %v1082 = vld [vmem:[%s5 + $0x38] sm:$0xff]
    %v1083 = vld [vmem:[%s5 + $0x40] sm:$0xff]
    %v1084 = vld [vmem:[%s5 + $0x48] sm:$0xff]
    %v1085 = vld [vmem:[%s5 + $0x50] sm:$0xff]
    %v1086 = vld [vmem:[%s5 + $0x58] sm:$0xff]
    %v1087 = vld [vmem:[%s5 + $0x60] sm:$0xff]
    %v1088 = vld [vmem:[%s5 + $0x68] sm:$0xff]
    %v1089 = vld [vmem:[%s5 + $0x70] sm:$0xff]
    %v1090 = vld [vmem:[%s5 + $0x78] sm:$0xff]
    %v1091 = vld [vmem:[%s6] sm:$0x1]
    %v1093 = vperm.slane %v1091, 0
    %v1096 = vrot.slane %v1074, 6
    %1098 = vmatpush.msra.mxu0 %v1090
    %1099 = vmatpush.msra.mxu0 %v1089
    %1100 = vmatpush.msra.mxu0 %v1088
    %1101 = vmatpush.msra.mxu0 %v1087
    %1102 = vmatpush.msra.mxu0 %v1086
    %1103 = vmatpush.msra.mxu0 %v1085
    %1104 = vmatpush.msra.mxu0 %v1084
    %1105 = vmatpush.msra.mxu0 %v1083
    %1106 = vmatpush.msra.mxu0 %v1082
    %1107 = vmatpush.msra.mxu0 %v1081
    %1108 = vmatpush.msra.mxu0 %v1080
    %1109 = vmatpush.msra.mxu0 %v1079
    %1110 = vmatpush.msra.mxu0 %v1078
    %1111 = vmatpush.msra.mxu0 %v1077
    %1112 = vmatpush.msra.mxu0 %v1076
    %1113 = vmatpush.msra.mxu0 %v1075
    %1114 = vmatmul.f32.gmra.mxu0 %v1096
    %v1115 = vpop.f32.mrf.mxu0
    %v1116 = vadd.f32 %v1093, %v1115
    %1117 = vdwg.mxu0
    %1118 = vst.msk [vmem:[#allocation4] sm:$0x3] %vm279, %v1116
    %1120 = vrot.lane.b32.xlu0 %v1116, 96
    %v1121 = vpop.permute.xlu0 %1120
    %1123 = vst.msk [vmem:[#allocation6] sm:$0x3] %vm279, %v1121
    // Predicated region
    $region30: #{encoder_forward.1} parent=1 // pred_check
      _
    $region31: #{encoder_forward.1} parent=1 // pred_check_branch
      %1125 = sbr.rel (0) target = $region33
    $region32: #{encoder_forward.1} parent=1 // pred_region
      %1127 = vsyncadd [#allocation3], 0
      %s1128 = sshll.u32 [#allocation2], 4
      %s1129 = int_to_ptr.vmem [resolvable:$true] %s1128
      %s1130 = sshll.u32 %s7, 4
      %s1131 = int_to_ptr.hbm [resolvable:$true] %s1130
      %1136 = dma.vmem_to_hbm [thread:$0]  %s1129, 256, %s1131, [#allocation3], 32, 32, 2
    $region33: #{encoder_forward.1} parent=1 // pred_fallthru
      _
    // Predicated region
    $region34: #{encoder_forward.1} parent=1 // pred_check
      _
    $region35: #{encoder_forward.1} parent=1 // pred_check_branch
      %1138 = sbr.rel (0) target = $region37
    $region36: #{encoder_forward.1} parent=1 // pred_region
      %1140 = vsyncadd [#allocation5], 0
      %s1142 = sshll.u32 [#allocation4], 4
      %s1143 = int_to_ptr.vmem [resolvable:$true] %s1142
      %s1144 = sshll.u32 %s8, 4
      %s1145 = int_to_ptr.hbm [resolvable:$true] %s1144
      %1147 = dma.vmem_to_hbm [thread:$0]  %s1143, 32, %s1145, [#allocation5]
    $region37: #{encoder_forward.1} parent=1 // pred_fallthru
      _
    // Predicated region
    $region38: #{encoder_forward.1} parent=1 // pred_check
      _
    $region39: #{encoder_forward.1} parent=1 // pred_check_branch
      %1149 = sbr.rel (0) target = $region41
    $region40: #{encoder_forward.1} parent=1 // pred_region
      %1151 = vsyncadd [#allocation5], 0
      %s1153 = sshll.u32 [#allocation6], 4
      %s1154 = int_to_ptr.vmem [resolvable:$true] %s1153
      %s1155 = sshll.u32 %s9, 4
      %s1156 = int_to_ptr.hbm [resolvable:$true] %s1155
      %1158 = dma.vmem_to_hbm [thread:$0]  %s1154, 32, %s1156, [#allocation5]
    $region41: #{encoder_forward.1} parent=1 // pred_fallthru
      _
    // Predicated region
    $region42: #{encoder_forward.1} parent=1 // pred_check
      _
    $region43: #{encoder_forward.1} parent=1 // pred_check_branch
      %1160 = sbr.rel (0) target = $region45
    $region44: #{encoder_forward.1} parent=1 // pred_region
      %1162 = dma.done [#allocation3], 256
    $region45: #{encoder_forward.1} parent=1 // pred_fallthru
      _
    // Predicated region
    $region46: #{encoder_forward.1} parent=1 // pred_check
      _
    $region47: #{encoder_forward.1} parent=1 // pred_check_branch
      %1164 = sbr.rel (0) target = $region49
    $region48: #{encoder_forward.1} parent=1 // pred_region
      %1166 = dma.done [#allocation5], 32
    $region49: #{encoder_forward.1} parent=1 // pred_fallthru
      _
    // Predicated region
    $region50: #{encoder_forward.1} parent=1 // pred_check
      _
    $region51: #{encoder_forward.1} parent=1 // pred_check_branch
      %1168 = sbr.rel (0) target = $region53
    $region52: #{encoder_forward.1} parent=1 // pred_region
      %1170 = dma.done [#allocation5], 32
    $region53: #{encoder_forward.1} parent=1 // pred_fallthru
      _
    %1171 = vsyncpa [#allocation3], 1
    %1172 = vsyncpa [#allocation5], 1

</llo_original>
